<compile_context>
chip_gen: v7x
topology: tpu7x:2x2x1
jax: 0.10.0
libtpu: 0.0.40
codegen_flags: <defaults>
</compile_context>

<pallas_src>
import functools

import jax
import jax.numpy as jnp
from jax import lax
from jax.experimental import pallas as pl
from jax.experimental.pallas import tpu as pltpu


# ------------------------------ fused kernel --------------------------------
# Activation layout: images stacked along rows, A[bt*H_layer + h, w*C + c].
# Everything along W (+ channel mixing) lives in host-built right-multiply
# matrices; everything along H is cheap sublane work.

def _cae_kernel(x_ref, m1_ref, b1_ref, m2_ref, b2_ref, d3_ref, b3_ref,
                d4_ref, b4_ref, out_ref, pbuf, ibuf, *, h, w, bt):
    H, W = h, w
    H2, W2, H4, W4 = H // 2, W // 2, H // 4, W // 4
    C1, C2, C3 = 16, 32, 16

    def taps(a, h_img):
        # a: (R, L) f32, images of h_img rows stacked along axis 0.
        # Returns (R, 3L) = [a(r-1) | a(r) | a(r+1)], zeros at image edges.
        R, L = a.shape
        ridx = lax.broadcasted_iota(jnp.int32, (R, 1), 0) % h_img
        zrow = jnp.zeros((1, L), a.dtype)
        up = jnp.concatenate([zrow, a[:-1]], axis=0)      # row r -> a[r-1]
        dn = jnp.concatenate([a[1:], zrow], axis=0)       # row r -> a[r+1]
        up = jnp.where(ridx != 0, up, 0.0)
        dn = jnp.where(ridx != h_img - 1, dn, 0.0)
        return jnp.concatenate([up, a, dn], axis=1)

    def mxu(a, m_ref):                                    # bf16 x bf16 -> f32
        return jnp.dot(a.astype(jnp.bfloat16), m_ref[...],
                       preferred_element_type=jnp.float32)

    def pool_rows(v, rows_out):
        # max over row pairs (2k, 2k+1) via stride-2 reads from VMEM scratch.
        pbuf[0:v.shape[0], :] = v
        ev = pbuf[pl.ds(0, rows_out, stride=2), :]
        od = pbuf[pl.ds(1, rows_out, stride=2), :]
        return jnp.maximum(ev, od)

    # ---------------- encoder: conv3x3 -> relu -> maxpool2x2 ---------------
    x = x_ref[...].astype(jnp.float32)                    # (bt*H, W)
    a = mxu(taps(x, H), m1_ref) + b1_ref[...]             # (bt*H, W*C1)
    a = jnp.maximum(a, 0.0)
    a = jnp.maximum(a[:, :W2 * C1], a[:, W2 * C1:])       # width pool (halves)
    a = pool_rows(a, bt * H2)                             # (bt*H2, W2*C1)

    g = mxu(taps(a, H2), m2_ref) + b2_ref[...]            # (bt*H2, W2*C2)
    g = jnp.maximum(g, 0.0)
    g = jnp.maximum(g[:, :W4 * C2], g[:, W4 * C2:])       # width pool
    z = pool_rows(g, bt * H4)                             # (bt*H4, W4*C2)

    # ------------- decoder: convT2x2 s2 -> relu -> convT2x2 s2 -------------
    d = mxu(z, d3_ref) + b3_ref[...]                      # (bt*H4, 2*W2*C3)
    d = jnp.maximum(d, 0.0)
    half = W2 * C3
    ibuf[pl.ds(0, bt * H4, stride=2), :] = d[:, :half]    # even output rows
    ibuf[pl.ds(1, bt * H4, stride=2), :] = d[:, half:]    # odd  output rows
    a1 = ibuf[...]                                        # (bt*H2, W2*C3)

    y = mxu(a1, d4_ref) + b4_ref[...]                     # (bt*H2, 2*W)
    out_ref[pl.ds(0, bt * H2, stride=2), :] = y[:, :W].astype(out_ref.dtype)
    out_ref[pl.ds(1, bt * H2, stride=2), :] = y[:, W:].astype(out_ref.dtype)


# ---------------- host-side constant-matrix construction --------------------

def _conv_matrix(w, width):
    """w: (Cout, Cin, 3, 3) torch Conv2d weights.  Returns (3*width*Cin,
    width*Cout) bf16 so that [x(i-1)|x(i)|x(i+1)] @ M == 'same' conv at row i,
    with output columns permuted so the width-pool partners (even/odd w_out)
    form the two lane halves."""
    cout, cin = w.shape[0], w.shape[1]
    mats = []
    for kh in range(3):
        m = jnp.zeros((width * cin, width * cout), jnp.float32)
        for kw in range(3):
            band = jnp.eye(width, k=1 - kw, dtype=jnp.float32)
            m = m + jnp.kron(band, w[:, :, kh, kw].astype(jnp.float32).T)
        mats.append(m)
    m = jnp.concatenate(mats, axis=0)                     # (3*width*cin, ...)
    src = [(2 * wp + q) * cout + c
           for q in range(2) for wp in range(width // 2) for c in range(cout)]
    return m[:, jnp.asarray(src)].astype(jnp.bfloat16)


def _deconv_matrix(w, width_in):
    """w: (Cin, Cout, 2, 2) torch ConvTranspose2d weights (k=2, s=2). Returns
    (width_in*Cin, 2*(2*width_in)*Cout) bf16; column p*(2*width_in*Cout) +
    (2j+q)*Cout + co holds the output for row-parity p, width 2j+q."""
    cin, cout = w.shape[0], w.shape[1]
    width_out = 2 * width_in
    blocks = []
    for p in range(2):
        m = jnp.zeros((width_in * cin, width_out * cout), jnp.float32)
        for q in range(2):
            g = jnp.zeros((width_in, width_out), jnp.float32)
            g = g.at[jnp.arange(width_in), 2 * jnp.arange(width_in) + q].set(1.0)
            m = m + jnp.kron(g, w[:, :, p, q].astype(jnp.float32))
        blocks.append(m)
    return jnp.concatenate(blocks, axis=1).astype(jnp.bfloat16)


def _bias_row(b, reps):
    return jnp.tile(b.astype(jnp.float32), reps)[None, :]


def _pick_bt(batch, h, target_rows=128):
    """Largest per-step batch with bt*h <= target_rows, bt | batch, 8 | bt*h."""
    best = batch
    for bt in range(min(batch, max(1, target_rows // h)), 0, -1):
        if batch % bt == 0 and (bt * h) % 8 == 0:
            best = bt
            break
    return best


# --------------------------------- model ------------------------------------

def init_params(key):
    ks = jax.random.split(key, 8)

    def u(k, shape, fan_in):
        bound = 1.0 / (fan_in ** 0.5)
        return jax.random.uniform(k, shape, jnp.float32, -bound, bound)

    return {
        "enc1_w": u(ks[0], (16, 1, 3, 3), 1 * 9),
        "enc1_b": u(ks[1], (16,), 1 * 9),
        "enc2_w": u(ks[2], (32, 16, 3, 3), 16 * 9),
        "enc2_b": u(ks[3], (32,), 16 * 9),
        "dec1_w": u(ks[4], (32, 16, 2, 2), 32 * 4),
        "dec1_b": u(ks[5], (16,), 32 * 4),
        "dec2_w": u(ks[6], (16, 1, 2, 2), 16 * 4),
        "dec2_b": u(ks[7], (1,), 16 * 4),
    }


def cae_forward(params, x_nchw):
    """Matches CAE.forward. x_nchw: (B, 1, H, W) -> (B, 1, H, W)."""
    B, C, H, W = x_nchw.shape
    assert C == 1 and H % 4 == 0 and W % 4 == 0
    H2, W2, W4 = H // 2, W // 2, W // 4
    Bt = _pick_bt(B, H)

    m1 = _conv_matrix(params["enc1_w"], W)        # (3*W,      16*W)
    b1 = _bias_row(params["enc1_b"], W)
    m2 = _conv_matrix(params["enc2_w"], W2)       # (3*16*W2,  32*W2)
    b2 = _bias_row(params["enc2_b"], W2)
    d3 = _deconv_matrix(params["dec1_w"], W4)     # (32*W4,    2*16*W2)
    b3 = _bias_row(params["dec1_b"], 2 * W2)
    d4 = _deconv_matrix(params["dec2_w"], W2)     # (16*W2,    2*W)
    b4 = _bias_row(params["dec2_b"], 2 * W)
    consts = [m1, b1, m2, b2, d3, b3, d4, b4]

    # flatten batch into rows (row = b*H + h): contiguous HBM blocks, no
    # in-kernel reshapes; shipped as bf16 to halve the streaming DMA.
    x = x_nchw[:, 0].reshape(B * H, W).astype(jnp.bfloat16)

    kernel = functools.partial(_cae_kernel, h=H, w=W, bt=Bt)
    out = pl.pallas_call(
        kernel,
        out_shape=jax.ShapeDtypeStruct((B * H, W), jnp.float32),
        grid=(B // Bt,),
        in_specs=[pl.BlockSpec((Bt * H, W), lambda i: (i, 0))]
                 + [pl.BlockSpec(a.shape, lambda i: (0, 0)) for a in consts],
        out_specs=pl.BlockSpec((Bt * H, W), lambda i: (i, 0)),
        scratch_shapes=[pltpu.VMEM((Bt * H, 8 * W), jnp.float32),   # pool buf
                        pltpu.VMEM((Bt * H2, 8 * W), jnp.float32)], # interleave
        compiler_params=pltpu.CompilerParams(
            dimension_semantics=("parallel",)),
    )(x, *consts)

    return out.reshape(B, 1, H, W)


# --------------------------- pure-JAX reference ------------------------------

def cae_reference(params, x_nchw):
    x = jnp.transpose(x_nchw, (0, 2, 3, 1))               # NCHW -> NHWC

    def conv(h, w, b):
        wj = jnp.transpose(w, (2, 3, 1, 0))               # OIHW -> HWIO
        y = jax.lax.conv_general_dilated(
            h, wj, (1, 1), "SAME",
            dimension_numbers=("NHWC", "HWIO", "NHWC"))
        return y + b

    def pool(h):
        return jax.lax.reduce_window(h, -jnp.inf, jax.lax.max,
                                     (1, 2, 2, 1), (1, 2, 2, 1), "VALID")

    def deconv(h, w, b):                                  # k=2, s=2, no overlap
        Bh, Hh, Wh, _ = h.shape
        Co = w.shape[1]
        y = jnp.einsum("bijc,copq->bipjqo", h, w)
        return y.reshape(Bh, 2 * Hh, 2 * Wh, Co) + b

    h = jax.nn.relu(conv(x, params["enc1_w"], params["enc1_b"]))
    h = pool(h)
    h = jax.nn.relu(conv(h, params["enc2_w"], params["enc2_b"]))
    h = pool(h)
    h = jax.nn.relu(deconv(h, params["dec1_w"], params["dec1_b"]))
    h = deconv(h, params["dec2_w"], params["dec2_b"])
    return jnp.transpose(h, (0, 3, 1, 2))


if __name__ == "__main__":
    key = jax.random.PRNGKey(0)
    pkey, xkey = jax.random.split(key)
    params = init_params(pkey)

    # small single-channel spectrogram-like patches
    x = jax.random.normal(xkey, (16, 1, 16, 16), dtype=jnp.float32)

    out = jax.jit(cae_forward)(params, x)
    out = jax.block_until_ready(out)

    assert out.shape == (16, 1, 16, 16), out.shape
    assert out.dtype == jnp.float32

    ref = cae_reference(params, x)
    max_err = float(jnp.max(jnp.abs(out - ref)))
    assert jnp.allclose(out, ref, atol=4e-2, rtol=4e-2), f"max abs err {max_err}"

    print("KERNEL_OK")
</pallas_src>

<mosaic_0001>
module attributes {stable_mosaic.version = 11 : i64} {
  func.func @_cae_kernel(%arg0: i32, %arg1: memref<128x16xbf16, #tpu.memory_space<vmem>>, %arg2: memref<48x256xbf16, #tpu.memory_space<vmem>>, %arg3: memref<1x256xf32, #tpu.memory_space<vmem>>, %arg4: memref<384x256xbf16, #tpu.memory_space<vmem>>, %arg5: memref<1x256xf32, #tpu.memory_space<vmem>>, %arg6: memref<128x256xbf16, #tpu.memory_space<vmem>>, %arg7: memref<1x256xf32, #tpu.memory_space<vmem>>, %arg8: memref<128x32xbf16, #tpu.memory_space<vmem>>, %arg9: memref<1x32xf32, #tpu.memory_space<vmem>>, %arg10: memref<128x16xf32, #tpu.memory_space<vmem>>, %arg11: memref<128x128xf32, #tpu.memory_space<vmem>>, %arg12: memref<64x128xf32, #tpu.memory_space<vmem>>) attributes {dimension_semantics = [#tpu.dimension_semantics<parallel>], iteration_bounds = array<i64: 2>, scalar_prefetch = 0 : i64, scratch_operands = 2 : i64, tpu.core_type = #tpu.core_type<tc>, window_params = [{transform_indices = @transform_0, window_bounds = array<i64: 128, 16>}, {pipeline_mode = #tpu.pipeline_mode<synchronous>, transform_indices = @transform_1, window_bounds = array<i64: 48, 256>}, {pipeline_mode = #tpu.pipeline_mode<synchronous>, transform_indices = @transform_2, window_bounds = array<i64: 1, 256>}, {pipeline_mode = #tpu.pipeline_mode<synchronous>, transform_indices = @transform_3, window_bounds = array<i64: 384, 256>}, {pipeline_mode = #tpu.pipeline_mode<synchronous>, transform_indices = @transform_4, window_bounds = array<i64: 1, 256>}, {pipeline_mode = #tpu.pipeline_mode<synchronous>, transform_indices = @transform_5, window_bounds = array<i64: 128, 256>}, {pipeline_mode = #tpu.pipeline_mode<synchronous>, transform_indices = @transform_6, window_bounds = array<i64: 1, 256>}, {pipeline_mode = #tpu.pipeline_mode<synchronous>, transform_indices = @transform_7, window_bounds = array<i64: 128, 32>}, {pipeline_mode = #tpu.pipeline_mode<synchronous>, transform_indices = @transform_8, window_bounds = array<i64: 1, 32>}, {transform_indices = @transform_9, window_bounds = array<i64: 128, 16>}]} {
    %c0 = arith.constant 0 : index
    %c0_0 = arith.constant 0 : index
    %0 = vector.load %arg1[%c0, %c0_0] : memref<128x16xbf16, #tpu.memory_space<vmem>>, vector<128x16xbf16>
    %1 = arith.extf %0 : vector<128x16xbf16> to vector<128x16xf32>
    %2 = tpu.iota {dimensions = array<i32: 0>} : vector<128x1xi32>
    %c16_i32 = arith.constant 16 : i32
    %c0_i32 = arith.constant 0 : i32
    %3 = arith.cmpi eq, %c16_i32, %c0_i32 : i32
    %c1_i32 = arith.constant 1 : i32
    %4 = arith.select %3, %c1_i32, %c16_i32 : i32
    %5 = vector.broadcast %4 : i32 to vector<128x1xi32>
    %6 = arith.remsi %2, %5 : vector<128x1xi32>
    %c0_i32_1 = arith.constant 0 : i32
    %7 = vector.broadcast %c0_i32_1 : i32 to vector<128x1xi32>
    %8 = arith.cmpi ne, %6, %7 : vector<128x1xi32>
    %c0_i32_2 = arith.constant 0 : i32
    %9 = vector.broadcast %c0_i32_2 : i32 to vector<128x1xi32>
    %10 = arith.cmpi slt, %6, %9 : vector<128x1xi32>
    %c0_i32_3 = arith.constant 0 : i32
    %11 = arith.cmpi slt, %4, %c0_i32_3 : i32
    %12 = vector.broadcast %11 : i1 to vector<128x1xi1>
    %13 = vector.broadcast %12 : vector<128x1xi1> to vector<128x1xi1>
    %14 = arith.xori %10, %13 : vector<128x1xi1>
    %15 = arith.andi %14, %8 : vector<128x1xi1>
    %16 = vector.broadcast %4 : i32 to vector<128x1xi32>
    %17 = arith.addi %6, %16 : vector<128x1xi32>
    %18 = arith.select %15, %17, %6 : vector<128x1xi1>, vector<128x1xi32>
    %cst = arith.constant 0.000000e+00 : f32
    %19 = vector.broadcast %cst : f32 to vector<1x16xf32>
    %20 = vector.extract_strided_slice %1 {offsets = [0, 0], sizes = [127, 16], strides = [1, 1]} : vector<128x16xf32> to vector<127x16xf32>
    %21 = tpu.concatenate %19, %20 in 0 : vector<1x16xf32>, vector<127x16xf32> -> vector<128x16xf32>
    %22 = vector.extract_strided_slice %1 {offsets = [1, 0], sizes = [127, 16], strides = [1, 1]} : vector<128x16xf32> to vector<127x16xf32>
    %23 = tpu.concatenate %22, %19 in 0 : vector<127x16xf32>, vector<1x16xf32> -> vector<128x16xf32>
    %c0_i32_4 = arith.constant 0 : i32
    %24 = vector.broadcast %c0_i32_4 : i32 to vector<128x1xi32>
    %25 = arith.cmpi ne, %18, %24 : vector<128x1xi32>
    %cst_5 = arith.constant 0.000000e+00 : f32
    %26 = vector.shape_cast %25 : vector<128x1xi1> to vector<128x1xi1>
    %27 = vector.broadcast %26 : vector<128x1xi1> to vector<128x16xi1>
    %28 = vector.broadcast %cst_5 : f32 to vector<128x16xf32>
    %29 = arith.select %27, %21, %28 : vector<128x16xi1>, vector<128x16xf32>
    %c15_i32 = arith.constant 15 : i32
    %30 = vector.broadcast %c15_i32 : i32 to vector<128x1xi32>
    %31 = arith.cmpi ne, %18, %30 : vector<128x1xi32>
    %cst_6 = arith.constant 0.000000e+00 : f32
    %32 = vector.shape_cast %31 : vector<128x1xi1> to vector<128x1xi1>
    %33 = vector.broadcast %32 : vector<128x1xi1> to vector<128x16xi1>
    %34 = vector.broadcast %cst_6 : f32 to vector<128x16xf32>
    %35 = arith.select %33, %23, %34 : vector<128x16xi1>, vector<128x16xf32>
    %36 = tpu.concatenate %29, %1, %35 in 1 : vector<128x16xf32>, vector<128x16xf32>, vector<128x16xf32> -> vector<128x48xf32>
    %37 = arith.truncf %36 : vector<128x48xf32> to vector<128x48xbf16>
    %c0_7 = arith.constant 0 : index
    %c0_8 = arith.constant 0 : index
    %38 = vector.load %arg2[%c0_7, %c0_8] : memref<48x256xbf16, #tpu.memory_space<vmem>>, vector<48x256xbf16>
    %cst_9 = arith.constant dense<0.000000e+00> : vector<128x256xf32>
    %39 = tpu.matmul %37, %38, %cst_9 {dimension_numbers = #tpu.dot_dimension_numbers<[1], [0], [0], [1], [0, 0, 1, 1], [], []>} : vector<128x48xbf16>, vector<48x256xbf16>, vector<128x256xf32> -> vector<128x256xf32>
    %c0_10 = arith.constant 0 : index
    %c0_11 = arith.constant 0 : index
    %40 = vector.load %arg3[%c0_10, %c0_11] : memref<1x256xf32, #tpu.memory_space<vmem>>, vector<1x256xf32>
    %41 = vector.broadcast %40 : vector<1x256xf32> to vector<128x256xf32>
    %42 = arith.addf %39, %41 : vector<128x256xf32>
    %cst_12 = arith.constant 0.000000e+00 : f32
    %43 = vector.broadcast %cst_12 : f32 to vector<128x256xf32>
    %44 = arith.maximumf %42, %43 : vector<128x256xf32>
    %45 = vector.extract_strided_slice %44 {offsets = [0, 0], sizes = [128, 128], strides = [1, 1]} : vector<128x256xf32> to vector<128x128xf32>
    %46 = vector.extract_strided_slice %44 {offsets = [0, 128], sizes = [128, 128], strides = [1, 1]} : vector<128x256xf32> to vector<128x128xf32>
    %47 = arith.maximumf %45, %46 : vector<128x128xf32>
    %c0_13 = arith.constant 0 : index
    %c0_14 = arith.constant 0 : index
    %48 = vector.load %arg11[%c0_13, %c0_14] : memref<128x128xf32, #tpu.memory_space<vmem>>, vector<128x128xf32>
    tpu.vector_store %arg11[%c0_13, %c0_14], %47 {strides = array<i32>} : memref<128x128xf32, #tpu.memory_space<vmem>>, vector<128x128xf32>,
    %c0_15 = arith.constant 0 : index
    %c0_16 = arith.constant 0 : index
    %49 = tpu.strided_load %arg11[%c0_15, %c0_16] {strides = array<i32: 2, 1>} : memref<128x128xf32, #tpu.memory_space<vmem>>, vector<64x128xf32>
    %c1 = arith.constant 1 : index
    %c0_17 = arith.constant 0 : index
    %50 = tpu.strided_load %arg11[%c1, %c0_17] {strides = array<i32: 2, 1>} : memref<128x128xf32, #tpu.memory_space<vmem>>, vector<64x128xf32>
    %51 = arith.maximumf %49, %50 : vector<64x128xf32>
    %52 = tpu.iota {dimensions = array<i32: 0>} : vector<64x1xi32>
    %c8_i32 = arith.constant 8 : i32
    %c0_i32_18 = arith.constant 0 : i32
    %53 = arith.cmpi eq, %c8_i32, %c0_i32_18 : i32
    %c1_i32_19 = arith.constant 1 : i32
    %54 = arith.select %53, %c1_i32_19, %c8_i32 : i32
    %55 = vector.broadcast %54 : i32 to vector<64x1xi32>
    %56 = arith.remsi %52, %55 : vector<64x1xi32>
    %c0_i32_20 = arith.constant 0 : i32
    %57 = vector.broadcast %c0_i32_20 : i32 to vector<64x1xi32>
    %58 = arith.cmpi ne, %56, %57 : vector<64x1xi32>
    %c0_i32_21 = arith.constant 0 : i32
    %59 = vector.broadcast %c0_i32_21 : i32 to vector<64x1xi32>
    %60 = arith.cmpi slt, %56, %59 : vector<64x1xi32>
    %c0_i32_22 = arith.constant 0 : i32
    %61 = arith.cmpi slt, %54, %c0_i32_22 : i32
    %62 = vector.broadcast %61 : i1 to vector<64x1xi1>
    %63 = vector.broadcast %62 : vector<64x1xi1> to vector<64x1xi1>
    %64 = arith.xori %60, %63 : vector<64x1xi1>
    %65 = arith.andi %64, %58 : vector<64x1xi1>
    %66 = vector.broadcast %54 : i32 to vector<64x1xi32>
    %67 = arith.addi %56, %66 : vector<64x1xi32>
    %68 = arith.select %65, %67, %56 : vector<64x1xi1>, vector<64x1xi32>
    %cst_23 = arith.constant 0.000000e+00 : f32
    %69 = vector.broadcast %cst_23 : f32 to vector<1x128xf32>
    %70 = vector.extract_strided_slice %51 {offsets = [0, 0], sizes = [63, 128], strides = [1, 1]} : vector<64x128xf32> to vector<63x128xf32>
    %71 = tpu.concatenate %69, %70 in 0 : vector<1x128xf32>, vector<63x128xf32> -> vector<64x128xf32>
    %72 = vector.extract_strided_slice %51 {offsets = [1, 0], sizes = [63, 128], strides = [1, 1]} : vector<64x128xf32> to vector<63x128xf32>
    %73 = tpu.concatenate %72, %69 in 0 : vector<63x128xf32>, vector<1x128xf32> -> vector<64x128xf32>
    %c0_i32_24 = arith.constant 0 : i32
    %74 = vector.broadcast %c0_i32_24 : i32 to vector<64x1xi32>
    %75 = arith.cmpi ne, %68, %74 : vector<64x1xi32>
    %cst_25 = arith.constant 0.000000e+00 : f32
    %76 = vector.shape_cast %75 : vector<64x1xi1> to vector<64x1xi1>
    %77 = vector.broadcast %76 : vector<64x1xi1> to vector<64x128xi1>
    %78 = vector.broadcast %cst_25 : f32 to vector<64x128xf32>
    %79 = arith.select %77, %71, %78 : vector<64x128xi1>, vector<64x128xf32>
    %c7_i32 = arith.constant 7 : i32
    %80 = vector.broadcast %c7_i32 : i32 to vector<64x1xi32>
    %81 = arith.cmpi ne, %68, %80 : vector<64x1xi32>
    %cst_26 = arith.constant 0.000000e+00 : f32
    %82 = vector.shape_cast %81 : vector<64x1xi1> to vector<64x1xi1>
    %83 = vector.broadcast %82 : vector<64x1xi1> to vector<64x128xi1>
    %84 = vector.broadcast %cst_26 : f32 to vector<64x128xf32>
    %85 = arith.select %83, %73, %84 : vector<64x128xi1>, vector<64x128xf32>
    %86 = tpu.concatenate %79, %51, %85 in 1 : vector<64x128xf32>, vector<64x128xf32>, vector<64x128xf32> -> vector<64x384xf32>
    %87 = arith.truncf %86 : vector<64x384xf32> to vector<64x384xbf16>
    %c0_27 = arith.constant 0 : index
    %c0_28 = arith.constant 0 : index
    %88 = vector.load %arg4[%c0_27, %c0_28] : memref<384x256xbf16, #tpu.memory_space<vmem>>, vector<384x256xbf16>
    %cst_29 = arith.constant dense<0.000000e+00> : vector<64x256xf32>
    %89 = tpu.matmul %87, %88, %cst_29 {dimension_numbers = #tpu.dot_dimension_numbers<[1], [0], [0], [1], [0, 0, 1, 1], [], []>} : vector<64x384xbf16>, vector<384x256xbf16>, vector<64x256xf32> -> vector<64x256xf32>
    %c0_30 = arith.constant 0 : index
    %c0_31 = arith.constant 0 : index
    %90 = vector.load %arg5[%c0_30, %c0_31] : memref<1x256xf32, #tpu.memory_space<vmem>>, vector<1x256xf32>
    %91 = vector.broadcast %90 : vector<1x256xf32> to vector<64x256xf32>
    %92 = arith.addf %89, %91 : vector<64x256xf32>
    %cst_32 = arith.constant 0.000000e+00 : f32
    %93 = vector.broadcast %cst_32 : f32 to vector<64x256xf32>
    %94 = arith.maximumf %92, %93 : vector<64x256xf32>
    %95 = vector.extract_strided_slice %94 {offsets = [0, 0], sizes = [64, 128], strides = [1, 1]} : vector<64x256xf32> to vector<64x128xf32>
    %96 = vector.extract_strided_slice %94 {offsets = [0, 128], sizes = [64, 128], strides = [1, 1]} : vector<64x256xf32> to vector<64x128xf32>
    %97 = arith.maximumf %95, %96 : vector<64x128xf32>
    %c0_33 = arith.constant 0 : index
    %c0_34 = arith.constant 0 : index
    %98 = vector.load %arg11[%c0_33, %c0_34] : memref<128x128xf32, #tpu.memory_space<vmem>>, vector<64x128xf32>
    tpu.vector_store %arg11[%c0_33, %c0_34], %97 {strides = array<i32>} : memref<128x128xf32, #tpu.memory_space<vmem>>, vector<64x128xf32>,
    %c0_35 = arith.constant 0 : index
    %c0_36 = arith.constant 0 : index
    %99 = tpu.strided_load %arg11[%c0_35, %c0_36] {strides = array<i32: 2, 1>} : memref<128x128xf32, #tpu.memory_space<vmem>>, vector<32x128xf32>
    %c1_37 = arith.constant 1 : index
    %c0_38 = arith.constant 0 : index
    %100 = tpu.strided_load %arg11[%c1_37, %c0_38] {strides = array<i32: 2, 1>} : memref<128x128xf32, #tpu.memory_space<vmem>>, vector<32x128xf32>
    %101 = arith.maximumf %99, %100 : vector<32x128xf32>
    %102 = arith.truncf %101 : vector<32x128xf32> to vector<32x128xbf16>
    %c0_39 = arith.constant 0 : index
    %c0_40 = arith.constant 0 : index
    %103 = vector.load %arg6[%c0_39, %c0_40] : memref<128x256xbf16, #tpu.memory_space<vmem>>, vector<128x256xbf16>
    %cst_41 = arith.constant dense<0.000000e+00> : vector<32x256xf32>
    %104 = tpu.matmul %102, %103, %cst_41 {dimension_numbers = #tpu.dot_dimension_numbers<[1], [0], [0], [1], [0, 0, 1, 1], [], []>} : vector<32x128xbf16>, vector<128x256xbf16>, vector<32x256xf32> -> vector<32x256xf32>
    %c0_42 = arith.constant 0 : index
    %c0_43 = arith.constant 0 : index
    %105 = vector.load %arg7[%c0_42, %c0_43] : memref<1x256xf32, #tpu.memory_space<vmem>>, vector<1x256xf32>
    %106 = vector.broadcast %105 : vector<1x256xf32> to vector<32x256xf32>
    %107 = arith.addf %104, %106 : vector<32x256xf32>
    %cst_44 = arith.constant 0.000000e+00 : f32
    %108 = vector.broadcast %cst_44 : f32 to vector<32x256xf32>
    %109 = arith.maximumf %107, %108 : vector<32x256xf32>
    %110 = vector.extract_strided_slice %109 {offsets = [0, 0], sizes = [32, 128], strides = [1, 1]} : vector<32x256xf32> to vector<32x128xf32>
    %c0_45 = arith.constant 0 : index
    %c0_46 = arith.constant 0 : index
    %111 = tpu.strided_load %arg12[%c0_45, %c0_46] {strides = array<i32: 2, 1>} : memref<64x128xf32, #tpu.memory_space<vmem>>, vector<32x128xf32>
    tpu.strided_store %arg12[%c0_45, %c0_46], %110 {strides = array<i32: 2, 1>} : memref<64x128xf32, #tpu.memory_space<vmem>>, vector<32x128xf32>
    %112 = vector.extract_strided_slice %109 {offsets = [0, 128], sizes = [32, 128], strides = [1, 1]} : vector<32x256xf32> to vector<32x128xf32>
    %c1_47 = arith.constant 1 : index
    %c0_48 = arith.constant 0 : index
    %113 = tpu.strided_load %arg12[%c1_47, %c0_48] {strides = array<i32: 2, 1>} : memref<64x128xf32, #tpu.memory_space<vmem>>, vector<32x128xf32>
    tpu.strided_store %arg12[%c1_47, %c0_48], %112 {strides = array<i32: 2, 1>} : memref<64x128xf32, #tpu.memory_space<vmem>>, vector<32x128xf32>
    %c0_49 = arith.constant 0 : index
    %c0_50 = arith.constant 0 : index
    %114 = vector.load %arg12[%c0_49, %c0_50] : memref<64x128xf32, #tpu.memory_space<vmem>>, vector<64x128xf32>
    %115 = arith.truncf %114 : vector<64x128xf32> to vector<64x128xbf16>
    %c0_51 = arith.constant 0 : index
    %c0_52 = arith.constant 0 : index
    %116 = vector.load %arg8[%c0_51, %c0_52] : memref<128x32xbf16, #tpu.memory_space<vmem>>, vector<128x32xbf16>
    %cst_53 = arith.constant dense<0.000000e+00> : vector<64x32xf32>
    %117 = tpu.matmul %115, %116, %cst_53 {dimension_numbers = #tpu.dot_dimension_numbers<[1], [0], [0], [1], [0, 0, 1, 1], [], []>} : vector<64x128xbf16>, vector<128x32xbf16>, vector<64x32xf32> -> vector<64x32xf32>
    %c0_54 = arith.constant 0 : index
    %c0_55 = arith.constant 0 : index
    %118 = vector.load %arg9[%c0_54, %c0_55] : memref<1x32xf32, #tpu.memory_space<vmem>>, vector<1x32xf32>
    %119 = vector.broadcast %118 : vector<1x32xf32> to vector<64x32xf32>
    %120 = arith.addf %117, %119 : vector<64x32xf32>
    %121 = vector.extract_strided_slice %120 {offsets = [0, 0], sizes = [64, 16], strides = [1, 1]} : vector<64x32xf32> to vector<64x16xf32>
    %c0_56 = arith.constant 0 : index
    %c0_57 = arith.constant 0 : index
    %122 = tpu.strided_load %arg10[%c0_56, %c0_57] {strides = array<i32: 2, 1>} : memref<128x16xf32, #tpu.memory_space<vmem>>, vector<64x16xf32>
    tpu.strided_store %arg10[%c0_56, %c0_57], %121 {strides = array<i32: 2, 1>} : memref<128x16xf32, #tpu.memory_space<vmem>>, vector<64x16xf32>
    %123 = vector.extract_strided_slice %120 {offsets = [0, 16], sizes = [64, 16], strides = [1, 1]} : vector<64x32xf32> to vector<64x16xf32>
    %c1_58 = arith.constant 1 : index
    %c0_59 = arith.constant 0 : index
    %124 = tpu.strided_load %arg10[%c1_58, %c0_59] {strides = array<i32: 2, 1>} : memref<128x16xf32, #tpu.memory_space<vmem>>, vector<64x16xf32>
    tpu.strided_store %arg10[%c1_58, %c0_59], %123 {strides = array<i32: 2, 1>} : memref<128x16xf32, #tpu.memory_space<vmem>>, vector<64x16xf32>
    return
  }
  func.func @transform_0(%arg0: i32) -> (i32, i32) {
    %c0_i32 = arith.constant 0 : i32
    %c0_i32_0 = arith.constant 0 : i32
    return %arg0, %c0_i32 : i32, i32
  }
  func.func @transform_1(%arg0: i32) -> (i32, i32) {
    %c0_i32 = arith.constant 0 : i32
    %c0_i32_0 = arith.constant 0 : i32
    %c0_i32_1 = arith.constant 0 : i32
    return %c0_i32, %c0_i32_0 : i32, i32
  }
  func.func @transform_2(%arg0: i32) -> (i32, i32) {
    %c0_i32 = arith.constant 0 : i32
    %c0_i32_0 = arith.constant 0 : i32
    %c0_i32_1 = arith.constant 0 : i32
    return %c0_i32, %c0_i32_0 : i32, i32
  }
  func.func @transform_3(%arg0: i32) -> (i32, i32) {
    %c0_i32 = arith.constant 0 : i32
    %c0_i32_0 = arith.constant 0 : i32
    %c0_i32_1 = arith.constant 0 : i32
    return %c0_i32, %c0_i32_0 : i32, i32
  }
  func.func @transform_4(%arg0: i32) -> (i32, i32) {
    %c0_i32 = arith.constant 0 : i32
    %c0_i32_0 = arith.constant 0 : i32
    %c0_i32_1 = arith.constant 0 : i32
    return %c0_i32, %c0_i32_0 : i32, i32
  }
  func.func @transform_5(%arg0: i32) -> (i32, i32) {
    %c0_i32 = arith.constant 0 : i32
    %c0_i32_0 = arith.constant 0 : i32
    %c0_i32_1 = arith.constant 0 : i32
    return %c0_i32, %c0_i32_0 : i32, i32
  }
  func.func @transform_6(%arg0: i32) -> (i32, i32) {
    %c0_i32 = arith.constant 0 : i32
    %c0_i32_0 = arith.constant 0 : i32
    %c0_i32_1 = arith.constant 0 : i32
    return %c0_i32, %c0_i32_0 : i32, i32
  }
  func.func @transform_7(%arg0: i32) -> (i32, i32) {
    %c0_i32 = arith.constant 0 : i32
    %c0_i32_0 = arith.constant 0 : i32
    %c0_i32_1 = arith.constant 0 : i32
    return %c0_i32, %c0_i32_0 : i32, i32
  }
  func.func @transform_8(%arg0: i32) -> (i32, i32) {
    %c0_i32 = arith.constant 0 : i32
    %c0_i32_0 = arith.constant 0 : i32
    %c0_i32_1 = arith.constant 0 : i32
    return %c0_i32, %c0_i32_0 : i32, i32
  }
  func.func @transform_9(%arg0: i32) -> (i32, i32) {
    %c0_i32 = arith.constant 0 : i32
    %c0_i32_0 = arith.constant 0 : i32
    return %arg0, %c0_i32 : i32, i32
  }
}

</mosaic_0001>

<llo_original>
// kernel: tile.24
$region0: #{tile.24}
  %s0 = inlined_call_operand.vmem [shape: f32[16,16], index: 0, kind: input, shape index: {}]
  %s1 = inlined_call_operand.vmem [shape: f32[1,256], index: 1, kind: output, shape index: {}]
  $region1: #{tile.24} parent=0
    #allocation0 [shape = 'u8[8192]{0}', space=vmem, size = 0x2000, scoped, tag = 'scoped mem for output reshape']
    %s2 = smov 3
    %v3 = vld [vmem:[%s0] ss:$8 sm:%s2]
    %vm4 = vcmask 130048
    %5 = vst.msk [vmem:[#allocation0] ss:$8 sm:$0x3] %vm4, %v3
    %s6 = scalar_lea.vmem %s0, 7
    %s7 = smov 3
    %v8 = vld [vmem:[%s6] ss:$8 sm:%s7]
    %9 = vrot.lane.b32.xlu0 %v8, 112
    %v10 = vpop.permute.xlu0 %9
    %vm11 = vcmask 1048448
    %12 = vst.msk [vmem:[#allocation0] ss:$8 sm:$0x3] %vm11, %v10
    %s13 = scalar_lea.vmem %s0, 6
    %s14 = smov 3
    %v15 = vld [vmem:[%s13] ss:$8 sm:%s14]
    %16 = vrot.lane.b32.xlu0 %v15, 96
    %v17 = vpop.permute.xlu0 %16
    %vm18 = vcmask 917248
    %19 = vst.msk [vmem:[#allocation0] ss:$8 sm:$0x3] %vm18, %v17
    %s20 = scalar_lea.vmem %s0, 5
    %s21 = smov 3
    %v22 = vld [vmem:[%s20] ss:$8 sm:%s21]
    %23 = vrot.lane.b32.xlu0 %v22, 80
    %v24 = vpop.permute.xlu0 %23
    %vm25 = vcmask 786048
    %26 = vst.msk [vmem:[#allocation0] ss:$8 sm:$0x3] %vm25, %v24
    %s27 = scalar_lea.vmem %s0, 4
    %s28 = smov 3
    %v29 = vld [vmem:[%s27] ss:$8 sm:%s28]
    %30 = vrot.lane.b32.xlu0 %v29, 64
    %v31 = vpop.permute.xlu0 %30
    %vm32 = vcmask 654848
    %33 = vst.msk [vmem:[#allocation0] ss:$8 sm:$0x3] %vm32, %v31
    %s34 = scalar_lea.vmem %s0, 3
    %s35 = smov 3
    %v36 = vld [vmem:[%s34] ss:$8 sm:%s35]
    %37 = vrot.lane.b32.xlu0 %v36, 48
    %v38 = vpop.permute.xlu0 %37
    %vm39 = vcmask 523648
    %40 = vst.msk [vmem:[#allocation0] ss:$8 sm:$0x3] %vm39, %v38
    %s41 = scalar_lea.vmem %s0, 2
    %s42 = smov 3
    %v43 = vld [vmem:[%s41] ss:$8 sm:%s42]
    %44 = vrot.lane.b32.xlu0 %v43, 32
    %v45 = vpop.permute.xlu0 %44
    %vm46 = vcmask 392448
    %47 = vst.msk [vmem:[#allocation0] ss:$8 sm:$0x3] %vm46, %v45
    %s48 = scalar_lea.vmem %s0, 1
    %s49 = smov 3
    %v50 = vld [vmem:[%s48] ss:$8 sm:%s49]
    %51 = vrot.lane.b32.xlu0 %v50, 16
    %v52 = vpop.permute.xlu0 %51
    %vm53 = vcmask 261248
    %54 = vst.msk [vmem:[#allocation0] ss:$8 sm:$0x3] %vm53, %v52
    %s56 = sshllo.u32 0, 1
    %v58 = vld [vmem:[#allocation0] sm:%s56]
    %s59 = sshllo.u32 0, 1
    %60 = vst [vmem:[%s1] sm:%s59] %v58
    %s61 = scalar_lea.vmem [#allocation0], 8
    %v62 = vld [vmem:[%s61] sm:%s56]
    %s63 = sshllo.u32 0, 1
    %s64 = scalar_lea.vmem %s1, 1
    %65 = vst [vmem:[%s64] sm:%s63] %v62

// kernel: tile.28
$region0: #{tile.28}
  #allocation0 [shape = 's32[1]{0}', space=sflag, size = 0x4, scoped, tag = 'scoped memory for tile.28']
  %s0 = inlined_call_operand.vmem [shape: f32[32], index: 0, kind: input, shape index: {}]
  %s1 = inlined_call_operand.vmem [shape: f32[8,32], index: 1, kind: output, shape index: {}]
  // Predicated region
  $region2: #{tile.28} parent=0 // pred_check
    _
  $region3: #{tile.28} parent=0 // pred_check_branch
    %3 = sbr.rel (0) target = $region5
  $region4: #{tile.28} parent=0 // pred_region
    _
  $region5: #{tile.28} parent=0 // pred_fallthru
    _
  %v4 = vld [vmem:[%s0] ss:$0 sm:$0xff]
  %5 = vst [vmem:[%s1] sm:$0xff] %v4

// kernel: tile.29
$region0: #{tile.29}
  %s0 = inlined_call_operand.vmem [shape: f32[8,32], index: 0, kind: input, shape index: {}]
  %s1 = inlined_call_operand.vmem [shape: f32[1,256], index: 1, kind: output, shape index: {}]
  $region1: #{tile.29} parent=0
    #allocation0 [shape = 'u8[8192]{0}', space=vmem, size = 0x2000, scoped, tag = 'scoped mem for output reshape']
    %s2 = smov 3
    %v3 = vld [vmem:[%s0] ss:$4 sm:%s2]
    %vm4 = vcmask 261120
    %5 = vst.msk [vmem:[#allocation0] ss:$8 sm:$0x3] %vm4, %v3
    %s6 = scalar_lea.vmem %s0, 3
    %s7 = smov 3
    %v8 = vld [vmem:[%s6] ss:$4 sm:%s7]
    %9 = vrot.lane.b32.xlu0 %v8, 96
    %v10 = vpop.permute.xlu0 %9
    %vm11 = vcmask 1048320
    %12 = vst.msk [vmem:[#allocation0] ss:$8 sm:$0x3] %vm11, %v10
    %s13 = scalar_lea.vmem %s0, 2
    %s14 = smov 3
    %v15 = vld [vmem:[%s13] ss:$4 sm:%s14]
    %16 = vrot.lane.b32.xlu0 %v15, 64
    %v17 = vpop.permute.xlu0 %16
    %vm18 = vcmask 785920
    %19 = vst.msk [vmem:[#allocation0] ss:$8 sm:$0x3] %vm18, %v17
    %s20 = scalar_lea.vmem %s0, 1
    %s21 = smov 3
    %v22 = vld [vmem:[%s20] ss:$4 sm:%s21]
    %23 = vrot.lane.b32.xlu0 %v22, 32
    %v24 = vpop.permute.xlu0 %23
    %vm25 = vcmask 523520
    %26 = vst.msk [vmem:[#allocation0] ss:$8 sm:$0x3] %vm25, %v24
    %s28 = sshllo.u32 0, 1
    %v30 = vld [vmem:[#allocation0] sm:%s28]
    %s31 = sshllo.u32 0, 1
    %32 = vst [vmem:[%s1] sm:%s31] %v30
    %s33 = scalar_lea.vmem [#allocation0], 8
    %v34 = vld [vmem:[%s33] sm:%s28]
    %s35 = sshllo.u32 0, 1
    %s36 = scalar_lea.vmem %s1, 1
    %37 = vst [vmem:[%s36] sm:%s35] %v34

// kernel: cae_forward.1
$region0: #{cae_forward.1}
  #allocation0 [shape = 'u32[]', space=smem, size = 0x4, offset = 0x4, fixed_abs, tag = 'smem constant byte address 0x4 - core index']
  #allocation1 [shape = 'u32[144,128]{1,0:T(1,128)}', space=vmem, size = 0x12000, scoped, tag = 'internal scratch']
  #allocation2 [shape = 'f32[128,128]{1,0:T(8,128)}', space=vmem, size = 0x10000, scoped, tag = 'scratch operand']
  #allocation3 [shape = 'f32[64,128]{1,0:T(8,128)}', space=vmem, size = 0x8000, scoped, tag = 'scratch operand']
  %s0 = inlined_call_operand.vmem [shape: bf16[256,16], index: 0, kind: input, shape index: {}]
  %s1 = inlined_call_operand.vmem [shape: bf16[48,256], index: 1, kind: input, shape index: {}]
  %s2 = inlined_call_operand.vmem [shape: f32[1,256], index: 2, kind: input, shape index: {}]
  %s3 = inlined_call_operand.vmem [shape: bf16[384,256], index: 3, kind: input, shape index: {}]
  %s4 = inlined_call_operand.vmem [shape: f32[1,256], index: 4, kind: input, shape index: {}]
  %s5 = inlined_call_operand.vmem [shape: bf16[128,256], index: 5, kind: input, shape index: {}]
  %s6 = inlined_call_operand.vmem [shape: f32[1,256], index: 6, kind: input, shape index: {}]
  %s7 = inlined_call_operand.vmem [shape: bf16[128,32], index: 7, kind: input, shape index: {}]
  %s8 = inlined_call_operand.vmem [shape: f32[1,32], index: 8, kind: input, shape index: {}]
  %s9 = inlined_call_operand.hbm [shape: f32[256,16], index: 9, kind: output, shape index: {}]
  %s10 = sld [smem:[#allocation0]]
  $region69: #{cae_forward.1} parent=0
    _
  %s12 = ssub.s32 1, %s10
  %s13 = scalar_select 0, %s12, %s10
  $region1: #{cae_forward.1} parent=0
    #allocation4 [shape = 'u8[131072]{0}', space=vmem, size = 0x20000, scoped, tag = 'output window, operand 0']
    #allocation5 [shape = 's32[2]{0}', space=sflag, size = 0x8, scoped, tag = 'scoped memory for cae_forward.1']
    %14 = vsyncpa [#allocation5], 0
    %s15 = scalar_lea.sflag [#allocation5], 1
    %16 = vsyncpa %s15, 0
    loop: start=0, step=1, limit=4
    $region2: #{cae_forward.1} parent=1 // loop_pre_header
      _
    $region3: #{cae_forward.1} parent=1 // loop_header
      %s18 = sphi 0, %s22
      %p19 = scmp.ge.s32.totalorder %s18, 4
      %s28 = sphi 0, %s30
      %s31 = sphi 0, %s28
      %s32 = sphi 0, %s31
      %s48 = sphi 0, %s32
      %s52 = sphi 0, %s52
      %s54 = sphi 0, %s52
      %s55 = sphi 0, %s54
      %s69 = sphi 0, %s55
      %s73 = sphi 0, %s73
      %s75 = sphi 0, %s73
      %s76 = sphi 0, %s75
      %s90 = sphi 0, %s76
      %s94 = sphi 0, %s94
      %s96 = sphi 0, %s94
      %s97 = sphi 0, %s96
      %s111 = sphi 0, %s97
      %s115 = sphi 0, %s115
      %s117 = sphi 0, %s115
      %s118 = sphi 0, %s117
      %s132 = sphi 0, %s118
      %s136 = sphi 0, %s136
      %s138 = sphi 0, %s136
      %s139 = sphi 0, %s138
      %s153 = sphi 0, %s139
      %s157 = sphi 0, %s157
      %s159 = sphi 0, %s157
      %s160 = sphi 0, %s159
      %s174 = sphi 0, %s160
      %s178 = sphi 0, %s178
      %s180 = sphi 0, %s178
      %s181 = sphi 0, %s180
      %s195 = sphi 0, %s181
      %s199 = sphi 0, %s199
      %s201 = sphi 0, %s199
      %s202 = sphi 0, %s201
      %s216 = sphi 0, %s202
      %s222 = sphi 0, %s224
      %s225 = sphi 0, %s222
      %s226 = sphi 0, %s225
      %s242 = sphi 0, %s226
    $region4: #{cae_forward.1} parent=1 // loop_header_branch
      %21 = sbr.rel (%p19) target = $region8
    $region5: #{cae_forward.1} parent=1 // loop_body
      %s23 = ssub.s32 %s18, 1
      %s24 = ssub.s32 %s18, 2
      %s25 = sadd.s32 %s18, 1
      %s26 = ssub.s32 %s18, %s25
      %p27 = scmp.eq.s32.totalorder %s26, 0
      %s29 = sadd.s32 %s28, 1
      %s30 = scalar_select %p27, %s28, %s29
      %p33 = pneg %p27
      %p34 = scmp.eq.s32.totalorder %s18, 1
      %p35 = por %p33, %p34
      %p36 = scmp.ne.s32.totalorder %s28, %s31
      %p37 = scmp.eq.s32.totalorder %s18, 0
      %p38 = por %p36, %p37
      %p39 = scmp.ne.s32.totalorder %s28, %s31
      %p40 = scmp.eq.s32.totalorder %s23, 1
      %p41 = por %p39, %p40
      %p42 = scmp.ne.s32.totalorder %s31, %s32
      %p43 = scmp.eq.s32.totalorder %s23, 0
      %p44 = por %p42, %p43
      %p45 = scmp.ne.s32.totalorder %s31, %s32
      %p46 = scmp.eq.s32.totalorder %s24, 1
      %p47 = por %p45, %p46
      %p49 = scmp.ne.s32.totalorder %s32, %s48
      %p50 = scmp.eq.s32.totalorder %s24, 0
      %p51 = por %p49, %p50
      %s53 = sadd.s32 %s52, 1
      %p56 = scmp.eq.s32.totalorder %s18, 1
      %p57 = scmp.ne.s32.totalorder %s52, %s54
      %p58 = scmp.eq.s32.totalorder %s18, 0
      %p59 = por %p57, %p58
      %p60 = scmp.ne.s32.totalorder %s52, %s54
      %p61 = scmp.eq.s32.totalorder %s23, 1
      %p62 = por %p60, %p61
      %p63 = scmp.ne.s32.totalorder %s54, %s55
      %p64 = scmp.eq.s32.totalorder %s23, 0
      %p65 = por %p63, %p64
      %p66 = scmp.ne.s32.totalorder %s54, %s55
      %p67 = scmp.eq.s32.totalorder %s24, 1
      %p68 = por %p66, %p67
      %p70 = scmp.ne.s32.totalorder %s55, %s69
      %p71 = scmp.eq.s32.totalorder %s24, 0
      %p72 = por %p70, %p71
      %s74 = sadd.s32 %s73, 1
      %p77 = scmp.eq.s32.totalorder %s18, 1
      %p78 = scmp.ne.s32.totalorder %s73, %s75
      %p79 = scmp.eq.s32.totalorder %s18, 0
      %p80 = por %p78, %p79
      %p81 = scmp.ne.s32.totalorder %s73, %s75
      %p82 = scmp.eq.s32.totalorder %s23, 1
      %p83 = por %p81, %p82
      %p84 = scmp.ne.s32.totalorder %s75, %s76
      %p85 = scmp.eq.s32.totalorder %s23, 0
      %p86 = por %p84, %p85
      %p87 = scmp.ne.s32.totalorder %s75, %s76
      %p88 = scmp.eq.s32.totalorder %s24, 1
      %p89 = por %p87, %p88
      %p91 = scmp.ne.s32.totalorder %s76, %s90
      %p92 = scmp.eq.s32.totalorder %s24, 0
      %p93 = por %p91, %p92
      %s95 = sadd.s32 %s94, 1
      %p98 = scmp.eq.s32.totalorder %s18, 1
      %p99 = scmp.ne.s32.totalorder %s94, %s96
      %p100 = scmp.eq.s32.totalorder %s18, 0
      %p101 = por %p99, %p100
      %p102 = scmp.ne.s32.totalorder %s94, %s96
      %p103 = scmp.eq.s32.totalorder %s23, 1
      %p104 = por %p102, %p103
      %p105 = scmp.ne.s32.totalorder %s96, %s97
      %p106 = scmp.eq.s32.totalorder %s23, 0
      %p107 = por %p105, %p106
      %p108 = scmp.ne.s32.totalorder %s96, %s97
      %p109 = scmp.eq.s32.totalorder %s24, 1
      %p110 = por %p108, %p109
      %p112 = scmp.ne.s32.totalorder %s97, %s111
      %p113 = scmp.eq.s32.totalorder %s24, 0
      %p114 = por %p112, %p113
      %s116 = sadd.s32 %s115, 1
      %p119 = scmp.eq.s32.totalorder %s18, 1
      %p120 = scmp.ne.s32.totalorder %s115, %s117
      %p121 = scmp.eq.s32.totalorder %s18, 0
      %p122 = por %p120, %p121
      %p123 = scmp.ne.s32.totalorder %s115, %s117
      %p124 = scmp.eq.s32.totalorder %s23, 1
      %p125 = por %p123, %p124
      %p126 = scmp.ne.s32.totalorder %s117, %s118
      %p127 = scmp.eq.s32.totalorder %s23, 0
      %p128 = por %p126, %p127
      %p129 = scmp.ne.s32.totalorder %s117, %s118
      %p130 = scmp.eq.s32.totalorder %s24, 1
      %p131 = por %p129, %p130
      %p133 = scmp.ne.s32.totalorder %s118, %s132
      %p134 = scmp.eq.s32.totalorder %s24, 0
      %p135 = por %p133, %p134
      %s137 = sadd.s32 %s136, 1
      %p140 = scmp.eq.s32.totalorder %s18, 1
      %p141 = scmp.ne.s32.totalorder %s136, %s138
      %p142 = scmp.eq.s32.totalorder %s18, 0
      %p143 = por %p141, %p142
      %p144 = scmp.ne.s32.totalorder %s136, %s138
      %p145 = scmp.eq.s32.totalorder %s23, 1
      %p146 = por %p144, %p145
      %p147 = scmp.ne.s32.totalorder %s138, %s139
      %p148 = scmp.eq.s32.totalorder %s23, 0
      %p149 = por %p147, %p148
      %p150 = scmp.ne.s32.totalorder %s138, %s139
      %p151 = scmp.eq.s32.totalorder %s24, 1
      %p152 = por %p150, %p151
      %p154 = scmp.ne.s32.totalorder %s139, %s153
      %p155 = scmp.eq.s32.totalorder %s24, 0
      %p156 = por %p154, %p155
      %s158 = sadd.s32 %s157, 1
      %p161 = scmp.eq.s32.totalorder %s18, 1
      %p162 = scmp.ne.s32.totalorder %s157, %s159
      %p163 = scmp.eq.s32.totalorder %s18, 0
      %p164 = por %p162, %p163
      %p165 = scmp.ne.s32.totalorder %s157, %s159
      %p166 = scmp.eq.s32.totalorder %s23, 1
      %p167 = por %p165, %p166
      %p168 = scmp.ne.s32.totalorder %s159, %s160
      %p169 = scmp.eq.s32.totalorder %s23, 0
      %p170 = por %p168, %p169
      %p171 = scmp.ne.s32.totalorder %s159, %s160
      %p172 = scmp.eq.s32.totalorder %s24, 1
      %p173 = por %p171, %p172
      %p175 = scmp.ne.s32.totalorder %s160, %s174
      %p176 = scmp.eq.s32.totalorder %s24, 0
      %p177 = por %p175, %p176
      %s179 = sadd.s32 %s178, 1
      %p182 = scmp.eq.s32.totalorder %s18, 1
      %p183 = scmp.ne.s32.totalorder %s178, %s180
      %p184 = scmp.eq.s32.totalorder %s18, 0
      %p185 = por %p183, %p184
      %p186 = scmp.ne.s32.totalorder %s178, %s180
      %p187 = scmp.eq.s32.totalorder %s23, 1
      %p188 = por %p186, %p187
      %p189 = scmp.ne.s32.totalorder %s180, %s181
      %p190 = scmp.eq.s32.totalorder %s23, 0
      %p191 = por %p189, %p190
      %p192 = scmp.ne.s32.totalorder %s180, %s181
      %p193 = scmp.eq.s32.totalorder %s24, 1
      %p194 = por %p192, %p193
      %p196 = scmp.ne.s32.totalorder %s181, %s195
      %p197 = scmp.eq.s32.totalorder %s24, 0
      %p198 = por %p196, %p197
      %s200 = sadd.s32 %s199, 1
      %p203 = scmp.eq.s32.totalorder %s18, 1
      %p204 = scmp.ne.s32.totalorder %s199, %s201
      %p205 = scmp.eq.s32.totalorder %s18, 0
      %p206 = por %p204, %p205
      %p207 = scmp.ne.s32.totalorder %s199, %s201
      %p208 = scmp.eq.s32.totalorder %s23, 1
      %p209 = por %p207, %p208
      %p210 = scmp.ne.s32.totalorder %s201, %s202
      %p211 = scmp.eq.s32.totalorder %s23, 0
      %p212 = por %p210, %p211
      %p213 = scmp.ne.s32.totalorder %s201, %s202
      %p214 = scmp.eq.s32.totalorder %s24, 1
      %p215 = por %p213, %p214
      %p217 = scmp.ne.s32.totalorder %s202, %s216
      %p218 = scmp.eq.s32.totalorder %s24, 0
      %p219 = por %p217, %p218
      %s220 = ssub.s32 %s18, %s25
      %p221 = scmp.eq.s32.totalorder %s220, 0
      %s223 = sadd.s32 %s222, 1
      %s224 = scalar_select %p221, %s222, %s223
      %p227 = pneg %p221
      %p228 = scmp.eq.s32.totalorder %s18, 1
      %p229 = por %p227, %p228
      %p230 = scmp.ne.s32.totalorder %s222, %s225
      %p231 = scmp.eq.s32.totalorder %s18, 0
      %p232 = por %p230, %p231
      %p233 = scmp.ne.s32.totalorder %s222, %s225
      %p234 = scmp.eq.s32.totalorder %s23, 1
      %p235 = por %p233, %p234
      %p236 = scmp.ne.s32.totalorder %s225, %s226
      %p237 = scmp.eq.s32.totalorder %s23, 0
      %p238 = por %p236, %p237
      %p239 = scmp.ne.s32.totalorder %s225, %s226
      %p240 = scmp.eq.s32.totalorder %s24, 1
      %p241 = por %p239, %p240
      %p243 = scmp.ne.s32.totalorder %s226, %s242
      %p244 = scmp.eq.s32.totalorder %s24, 0
      %p245 = por %p243, %p244
      %p246 = scmp.le.s32.totalorder 1, %s18
      %p247 = scmp.lt.s32.totalorder %s18, 3
      %p248 = pnand %p246, %p247
      %p249 = pneg %p248
      // Predicated region
      $region9: #{cae_forward.1} parent=5 // pred_check
        _
      $region10: #{cae_forward.1} parent=5 // pred_check_branch
        %251 = sbr.rel (%p248) target = $region12
      $region11: #{cae_forward.1} parent=5 // pred_region
        %s252 = ssub.s32 %s18, 1
        // Predicated region
        $region13: #{cae_forward.1} parent=11 // pred_check
          %p253 = pneg %p65
        $region14: #{cae_forward.1} parent=11 // pred_check_branch
          %255 = sbr.rel (%p253) target = $region16
        $region15: #{cae_forward.1} parent=11 // pred_region
          _
        $region16: #{cae_forward.1} parent=11 // pred_fallthru
          _
        // Predicated region
        $region17: #{cae_forward.1} parent=11 // pred_check
          %p256 = pneg %p86
        $region18: #{cae_forward.1} parent=11 // pred_check_branch
          %258 = sbr.rel (%p256) target = $region20
        $region19: #{cae_forward.1} parent=11 // pred_region
          _
        $region20: #{cae_forward.1} parent=11 // pred_fallthru
          _
        // Predicated region
        $region21: #{cae_forward.1} parent=11 // pred_check
          %p259 = pneg %p107
        $region22: #{cae_forward.1} parent=11 // pred_check_branch
          %261 = sbr.rel (%p259) target = $region24
        $region23: #{cae_forward.1} parent=11 // pred_region
          _
        $region24: #{cae_forward.1} parent=11 // pred_fallthru
          _
        // Predicated region
        $region25: #{cae_forward.1} parent=11 // pred_check
          %p262 = pneg %p128
        $region26: #{cae_forward.1} parent=11 // pred_check_branch
          %264 = sbr.rel (%p262) target = $region28
        $region27: #{cae_forward.1} parent=11 // pred_region
          _
        $region28: #{cae_forward.1} parent=11 // pred_fallthru
          _
        // Predicated region
        $region29: #{cae_forward.1} parent=11 // pred_check
          %p265 = pneg %p149
        $region30: #{cae_forward.1} parent=11 // pred_check_branch
          %267 = sbr.rel (%p265) target = $region32
        $region31: #{cae_forward.1} parent=11 // pred_region
          _
        $region32: #{cae_forward.1} parent=11 // pred_fallthru
          _
        // Predicated region
        $region33: #{cae_forward.1} parent=11 // pred_check
          %p268 = pneg %p170
        $region34: #{cae_forward.1} parent=11 // pred_check_branch
          %270 = sbr.rel (%p268) target = $region36
        $region35: #{cae_forward.1} parent=11 // pred_region
          _
        $region36: #{cae_forward.1} parent=11 // pred_fallthru
          _
        // Predicated region
        $region37: #{cae_forward.1} parent=11 // pred_check
          %p271 = pneg %p191
        $region38: #{cae_forward.1} parent=11 // pred_check_branch
          %273 = sbr.rel (%p271) target = $region40
        $region39: #{cae_forward.1} parent=11 // pred_region
          _
        $region40: #{cae_forward.1} parent=11 // pred_fallthru
          _
        // Predicated region
        $region41: #{cae_forward.1} parent=11 // pred_check
          %p274 = pneg %p212
        $region42: #{cae_forward.1} parent=11 // pred_check_branch
          %276 = sbr.rel (%p274) target = $region44
        $region43: #{cae_forward.1} parent=11 // pred_region
          _
        $region44: #{cae_forward.1} parent=11 // pred_fallthru
          _
      $region12: #{cae_forward.1} parent=5 // pred_fallthru
        _
      %p277 = scmp.lt.s32.totalorder %s18, 2
      // Predicated region
      $region45: #{cae_forward.1} parent=5 // pred_check
        %p278 = pneg %p277
      $region46: #{cae_forward.1} parent=5 // pred_check_branch
        %280 = sbr.rel (%p278) target = $region48
      $region47: #{cae_forward.1} parent=5 // pred_region
        // Predicated region
        $region49: #{cae_forward.1} parent=47 // pred_check
          %p281 = pneg %p38
        $region50: #{cae_forward.1} parent=47 // pred_check_branch
          %283 = sbr.rel (%p281) target = $region52
        $region51: #{cae_forward.1} parent=47 // pred_region
          %s284 = smul.u32 16, %s18
          %p285 = scmp.lt.s32.totalorder %s284, 31
          %s286 = scalar_select %p285, %s284, 31
          %s287 = smul.addr %s286, 4
          %s288 = scalar_lea.vmem %s0, %s287
          %s289 = smul.u32 16, %s18
        $region52: #{cae_forward.1} parent=47 // pred_fallthru
          _
      $region48: #{cae_forward.1} parent=5 // pred_fallthru
        _
      %p290 = scmp.le.s32.totalorder 1, %s18
      %p291 = scmp.lt.s32.totalorder %s18, 3
      %p292 = pnand %p290, %p291
      %p293 = pneg %p292
      // Predicated region
      $region53: #{cae_forward.1} parent=5 // pred_check
        _
      $region54: #{cae_forward.1} parent=5 // pred_check_branch
        %295 = sbr.rel (%p292) target = $region56
      $region55: #{cae_forward.1} parent=5 // pred_region
        %s296 = ssub.s32 %s18, 1
        %s297 = smul.u32 16, %s23
        %p298 = scmp.lt.s32.totalorder %s297, 31
        %s299 = scalar_select %p298, %s297, 31
        %s300 = smul.addr %s299, 4
        %s301 = scalar_lea.vmem %s0, %s300
        %p302 = pneg %p44
        %p303 = pneg %p41
        %p304 = pneg %p65
        %p305 = pneg %p62
        %p306 = pneg %p86
        %p307 = pneg %p83
        %p308 = pneg %p107
        %p309 = pneg %p104
        %p310 = pneg %p128
        %p311 = pneg %p125
        %p312 = pneg %p149
        %p313 = pneg %p146
        %p314 = pneg %p170
        %p315 = pneg %p167
        %p316 = pneg %p191
        %p317 = pneg %p188
        %p318 = pneg %p212
        %p319 = pneg %p209
        %p320 = pneg %p238
        %p321 = pneg %p235
        %s322 = sand.u32 %s225, 1
        %s323 = scalar_lea.sflag [#allocation5], %s322
        %s324 = sand.u32 %s225, 1
        %s325 = smul.addr %s324, 128
        %s326 = scalar_lea.vmem [#allocation4], %s325
        %s327 = smul.u32 16, %s23
        %p328 = scmp.lt.s32.totalorder %s327, 31
        %s329 = scalar_select %p328, %s327, 31
        %s330 = smul.addr %s329, 4
        %s331 = scalar_lea.vmem %s0, %s330
        %s332 = smul.u32 16, %s23
        %s333 = smul.u32 16, %s23
        %v335 = vld [vmem:[%s331] sm:$0xf]
        %v336 = vld [vmem:[%s331 + $0x4] sm:$0xf]
        %v337 = vld [vmem:[%s331 + $0x8] sm:$0xf]
        %v338 = vld [vmem:[%s331 + $0xc] sm:$0xf]
        %v339 = vld [vmem:[%s331 + $0x10] sm:$0xf]
        %v340 = vld [vmem:[%s331 + $0x14] sm:$0xf]
        %v341 = vld [vmem:[%s331 + $0x18] sm:$0xf]
        %v342 = vld [vmem:[%s331 + $0x1c] sm:$0xf]
        %v343 = vld [vmem:[%s331 + $0x20] sm:$0xf]
        %v344 = vld [vmem:[%s331 + $0x24] sm:$0xf]
        %v345 = vld [vmem:[%s331 + $0x28] sm:$0xf]
        %v346 = vld [vmem:[%s331 + $0x2c] sm:$0xf]
        %v347 = vld [vmem:[%s331 + $0x30] sm:$0xf]
        %v348 = vld [vmem:[%s331 + $0x34] sm:$0xf]
        %v349 = vld [vmem:[%s331 + $0x38] sm:$0xf]
        %v350 = vld [vmem:[%s331 + $0x3c] sm:$0xf]
        %v351 = vunpack.c.l.bf16 %v335
        %v352 = vunpack.c.l.bf16 %v336
        %v353 = vunpack.c.l.bf16 %v337
        %v354 = vunpack.c.l.bf16 %v338
        %v355 = vunpack.c.l.bf16 %v339
        %v356 = vunpack.c.l.bf16 %v340
        %v357 = vunpack.c.l.bf16 %v341
        %v358 = vunpack.c.l.bf16 %v342
        %v359 = vunpack.c.l.bf16 %v343
        %v360 = vunpack.c.l.bf16 %v344
        %v361 = vunpack.c.l.bf16 %v345
        %v362 = vunpack.c.l.bf16 %v346
        %v363 = vunpack.c.l.bf16 %v347
        %v364 = vunpack.c.l.bf16 %v348
        %v365 = vunpack.c.l.bf16 %v349
        %v366 = vunpack.c.l.bf16 %v350
        %v367 = vlaneseq
        %v368 = vshrl.u32 %v367, 7
        %v369 = vadd.s32 %v368, 8
        %v370 = vadd.s32 %v368, 16
        %v371 = vadd.s32 %v368, 24
        %v372 = vadd.s32 %v368, 32
        %v373 = vadd.s32 %v368, 40
        %v374 = vadd.s32 %v368, 48
        %v375 = vadd.s32 %v368, 56
        %v376 = vadd.s32 %v368, 64
        %v377 = vadd.s32 %v368, 72
        %v378 = vadd.s32 %v368, 80
        %v379 = vadd.s32 %v368, 88
        %v380 = vadd.s32 %v368, 96
        %v381 = vadd.s32 %v368, 104
        %v382 = vadd.s32 %v368, 112
        %v383 = vadd.s32 %v368, 120
        %vm384 = vcmp.lt.s32.totalorder %v368, 0
        %v385 = vsub.s32 0, %v368
        %v386 = vsel %vm384, %v385, %v368
        %v387 = vshrl.u32 %v386, 4
        %v388 = vand.u32 %v386, 15
        %v389 = vsub.s32 0, %v388
        %v390 = vsel %vm384, %v389, %v388
        %vm391 = vcmp.lt.s32.totalorder %v369, 0
        %v392 = vsub.s32 0, %v369
        %v393 = vsel %vm391, %v392, %v369
        %v394 = vshrl.u32 %v393, 4
        %v395 = vand.u32 %v393, 15
        %v396 = vsub.s32 0, %v395
        %v397 = vsel %vm391, %v396, %v395
        %vm398 = vcmp.lt.s32.totalorder %v370, 0
        %v399 = vsub.s32 0, %v370
        %v400 = vsel %vm398, %v399, %v370
        %v401 = vshrl.u32 %v400, 4
        %v402 = vand.u32 %v400, 15
        %v403 = vsub.s32 0, %v402
        %v404 = vsel %vm398, %v403, %v402
        %vm405 = vcmp.lt.s32.totalorder %v371, 0
        %v406 = vsub.s32 0, %v371
        %v407 = vsel %vm405, %v406, %v371
        %v408 = vshrl.u32 %v407, 4
        %v409 = vand.u32 %v407, 15
        %v410 = vsub.s32 0, %v409
        %v411 = vsel %vm405, %v410, %v409
        %vm412 = vcmp.lt.s32.totalorder %v372, 0
        %v413 = vsub.s32 0, %v372
        %v414 = vsel %vm412, %v413, %v372
        %v415 = vshrl.u32 %v414, 4
        %v416 = vand.u32 %v414, 15
        %v417 = vsub.s32 0, %v416
        %v418 = vsel %vm412, %v417, %v416
        %vm419 = vcmp.lt.s32.totalorder %v373, 0
        %v420 = vsub.s32 0, %v373
        %v421 = vsel %vm419, %v420, %v373
        %v422 = vshrl.u32 %v421, 4
        %v423 = vand.u32 %v421, 15
        %v424 = vsub.s32 0, %v423
        %v425 = vsel %vm419, %v424, %v423
        %vm426 = vcmp.lt.s32.totalorder %v374, 0
        %v427 = vsub.s32 0, %v374
        %v428 = vsel %vm426, %v427, %v374
        %v429 = vshrl.u32 %v428, 4
        %v430 = vand.u32 %v428, 15
        %v431 = vsub.s32 0, %v430
        %v432 = vsel %vm426, %v431, %v430
        %vm433 = vcmp.lt.s32.totalorder %v375, 0
        %v434 = vsub.s32 0, %v375
        %v435 = vsel %vm433, %v434, %v375
        %v436 = vshrl.u32 %v435, 4
        %v437 = vand.u32 %v435, 15
        %v438 = vsub.s32 0, %v437
        %v439 = vsel %vm433, %v438, %v437
        %vm440 = vcmp.lt.s32.totalorder %v376, 0
        %v441 = vsub.s32 0, %v376
        %v442 = vsel %vm440, %v441, %v376
        %v443 = vshrl.u32 %v442, 4
        %v444 = vand.u32 %v442, 15
        %v445 = vsub.s32 0, %v444
        %v446 = vsel %vm440, %v445, %v444
        %vm447 = vcmp.lt.s32.totalorder %v377, 0
        %v448 = vsub.s32 0, %v377
        %v449 = vsel %vm447, %v448, %v377
        %v450 = vshrl.u32 %v449, 4
        %v451 = vand.u32 %v449, 15
        %v452 = vsub.s32 0, %v451
        %v453 = vsel %vm447, %v452, %v451
        %vm454 = vcmp.lt.s32.totalorder %v378, 0
        %v455 = vsub.s32 0, %v378
        %v456 = vsel %vm454, %v455, %v378
        %v457 = vshrl.u32 %v456, 4
        %v458 = vand.u32 %v456, 15
        %v459 = vsub.s32 0, %v458
        %v460 = vsel %vm454, %v459, %v458
        %vm461 = vcmp.lt.s32.totalorder %v379, 0
        %v462 = vsub.s32 0, %v379
        %v463 = vsel %vm461, %v462, %v379
        %v464 = vshrl.u32 %v463, 4
        %v465 = vand.u32 %v463, 15
        %v466 = vsub.s32 0, %v465
        %v467 = vsel %vm461, %v466, %v465
        %vm468 = vcmp.lt.s32.totalorder %v380, 0
        %v469 = vsub.s32 0, %v380
        %v470 = vsel %vm468, %v469, %v380
        %v471 = vshrl.u32 %v470, 4
        %v472 = vand.u32 %v470, 15
        %v473 = vsub.s32 0, %v472
        %v474 = vsel %vm468, %v473, %v472
        %vm475 = vcmp.lt.s32.totalorder %v381, 0
        %v476 = vsub.s32 0, %v381
        %v477 = vsel %vm475, %v476, %v381
        %v478 = vshrl.u32 %v477, 4
        %v479 = vand.u32 %v477, 15
        %v480 = vsub.s32 0, %v479
        %v481 = vsel %vm475, %v480, %v479
        %vm482 = vcmp.lt.s32.totalorder %v382, 0
        %v483 = vsub.s32 0, %v382
        %v484 = vsel %vm482, %v483, %v382
        %v485 = vshrl.u32 %v484, 4
        %v486 = vand.u32 %v484, 15
        %v487 = vsub.s32 0, %v486
        %v488 = vsel %vm482, %v487, %v486
        %vm489 = vcmp.lt.s32.totalorder %v383, 0
        %v490 = vsub.s32 0, %v383
        %v491 = vsel %vm489, %v490, %v383
        %v492 = vshrl.u32 %v491, 4
        %v493 = vand.u32 %v491, 15
        %v494 = vsub.s32 0, %v493
        %v495 = vsel %vm489, %v494, %v493
        %vm496 = vcmp.ne.s32.totalorder %v390, 0
        %vm497 = vcmp.ne.s32.totalorder %v397, 0
        %vm498 = vcmp.ne.s32.totalorder %v404, 0
        %vm499 = vcmp.ne.s32.totalorder %v411, 0
        %vm500 = vcmp.ne.s32.totalorder %v418, 0
        %vm501 = vcmp.ne.s32.totalorder %v425, 0
        %vm502 = vcmp.ne.s32.totalorder %v432, 0
        %vm503 = vcmp.ne.s32.totalorder %v439, 0
        %vm504 = vcmp.ne.s32.totalorder %v446, 0
        %vm505 = vcmp.ne.s32.totalorder %v453, 0
        %vm506 = vcmp.ne.s32.totalorder %v460, 0
        %vm507 = vcmp.ne.s32.totalorder %v467, 0
        %vm508 = vcmp.ne.s32.totalorder %v474, 0
        %vm509 = vcmp.ne.s32.totalorder %v481, 0
        %vm510 = vcmp.ne.s32.totalorder %v488, 0
        %vm511 = vcmp.ne.s32.totalorder %v495, 0
        %vm512 = vcmp.lt.s32.totalorder %v390, 0
        %vm513 = vcmp.lt.s32.totalorder %v397, 0
        %vm514 = vcmp.lt.s32.totalorder %v404, 0
        %vm515 = vcmp.lt.s32.totalorder %v411, 0
        %vm516 = vcmp.lt.s32.totalorder %v418, 0
        %vm517 = vcmp.lt.s32.totalorder %v425, 0
        %vm518 = vcmp.lt.s32.totalorder %v432, 0
        %vm519 = vcmp.lt.s32.totalorder %v439, 0
        %vm520 = vcmp.lt.s32.totalorder %v446, 0
        %vm521 = vcmp.lt.s32.totalorder %v453, 0
        %vm522 = vcmp.lt.s32.totalorder %v460, 0
        %vm523 = vcmp.lt.s32.totalorder %v467, 0
        %vm524 = vcmp.lt.s32.totalorder %v474, 0
        %vm525 = vcmp.lt.s32.totalorder %v481, 0
        %vm526 = vcmp.lt.s32.totalorder %v488, 0
        %vm527 = vcmp.lt.s32.totalorder %v495, 0
        %vm528 = vmand %vm512, %vm496
        %vm529 = vmand %vm513, %vm497
        %vm530 = vmand %vm514, %vm498
        %vm531 = vmand %vm515, %vm499
        %vm532 = vmand %vm516, %vm500
        %vm533 = vmand %vm517, %vm501
        %vm534 = vmand %vm518, %vm502
        %vm535 = vmand %vm519, %vm503
        %vm536 = vmand %vm520, %vm504
        %vm537 = vmand %vm521, %vm505
        %vm538 = vmand %vm522, %vm506
        %vm539 = vmand %vm523, %vm507
        %vm540 = vmand %vm524, %vm508
        %vm541 = vmand %vm525, %vm509
        %vm542 = vmand %vm526, %vm510
        %vm543 = vmand %vm527, %vm511
        %v544 = vadd.s32 %v390, 16
        %v545 = vadd.s32 %v397, 16
        %v546 = vadd.s32 %v404, 16
        %v547 = vadd.s32 %v411, 16
        %v548 = vadd.s32 %v418, 16
        %v549 = vadd.s32 %v425, 16
        %v550 = vadd.s32 %v432, 16
        %v551 = vadd.s32 %v439, 16
        %v552 = vadd.s32 %v446, 16
        %v553 = vadd.s32 %v453, 16
        %v554 = vadd.s32 %v460, 16
        %v555 = vadd.s32 %v467, 16
        %v556 = vadd.s32 %v474, 16
        %v557 = vadd.s32 %v481, 16
        %v558 = vadd.s32 %v488, 16
        %v559 = vadd.s32 %v495, 16
        %v560 = vsel %vm528, %v544, %v390
        %v561 = vsel %vm529, %v545, %v397
        %v562 = vsel %vm530, %v546, %v404
        %v563 = vsel %vm531, %v547, %v411
        %v564 = vsel %vm532, %v548, %v418
        %v565 = vsel %vm533, %v549, %v425
        %v566 = vsel %vm534, %v550, %v432
        %v567 = vsel %vm535, %v551, %v439
        %v568 = vsel %vm536, %v552, %v446
        %v569 = vsel %vm537, %v553, %v453
        %v570 = vsel %vm538, %v554, %v460
        %v571 = vsel %vm539, %v555, %v467
        %v572 = vsel %vm540, %v556, %v474
        %v573 = vsel %vm541, %v557, %v481
        %v574 = vsel %vm542, %v558, %v488
        %v575 = vsel %vm543, %v559, %v495
        %vm592 = vcmask 1040384
        %v593 = vrot.slane %v351, 7
        %v594 = vrot.slane %v352, 7
        %v595 = vsel %vm592, %v593, %v594
        %v596 = vrot.slane %v353, 7
        %v597 = vsel %vm592, %v594, %v596
        %v598 = vrot.slane %v354, 7
        %v599 = vsel %vm592, %v596, %v598
        %v600 = vrot.slane %v355, 7
        %v601 = vsel %vm592, %v598, %v600
        %v602 = vrot.slane %v356, 7
        %v603 = vsel %vm592, %v600, %v602
        %v604 = vrot.slane %v357, 7
        %v605 = vsel %vm592, %v602, %v604
        %v606 = vrot.slane %v358, 7
        %v607 = vsel %vm592, %v604, %v606
        %v608 = vrot.slane %v359, 7
        %v609 = vsel %vm592, %v606, %v608
        %v610 = vrot.slane %v360, 7
        %v611 = vsel %vm592, %v608, %v610
        %v612 = vrot.slane %v361, 7
        %v613 = vsel %vm592, %v610, %v612
        %v614 = vrot.slane %v362, 7
        %v615 = vsel %vm592, %v612, %v614
        %v616 = vrot.slane %v363, 7
        %v617 = vsel %vm592, %v614, %v616
        %v618 = vrot.slane %v364, 7
        %v619 = vsel %vm592, %v616, %v618
        %v620 = vrot.slane %v365, 7
        %v621 = vsel %vm592, %v618, %v620
        %v622 = vrot.slane %v366, 7
        %v623 = vsel %vm592, %v620, %v622
        %v640 = vsel %vm592, 0.0, %v593
        %vm641 = vcmask 1046528
        %v642 = vrot.slane %v351, 1
        %v643 = vrot.slane %v352, 1
        %v644 = vsel %vm641, %v642, %v643
        %v645 = vrot.slane %v353, 1
        %v646 = vsel %vm641, %v643, %v645
        %v647 = vrot.slane %v354, 1
        %v648 = vsel %vm641, %v645, %v647
        %v649 = vrot.slane %v355, 1
        %v650 = vsel %vm641, %v647, %v649
        %v651 = vrot.slane %v356, 1
        %v652 = vsel %vm641, %v649, %v651
        %v653 = vrot.slane %v357, 1
        %v654 = vsel %vm641, %v651, %v653
        %v655 = vrot.slane %v358, 1
        %v656 = vsel %vm641, %v653, %v655
        %v657 = vrot.slane %v359, 1
        %v658 = vsel %vm641, %v655, %v657
        %v659 = vrot.slane %v360, 1
        %v660 = vsel %vm641, %v657, %v659
        %v661 = vrot.slane %v361, 1
        %v662 = vsel %vm641, %v659, %v661
        %v663 = vrot.slane %v362, 1
        %v664 = vsel %vm641, %v661, %v663
        %v665 = vrot.slane %v363, 1
        %v666 = vsel %vm641, %v663, %v665
        %v667 = vrot.slane %v364, 1
        %v668 = vsel %vm641, %v665, %v667
        %v669 = vrot.slane %v365, 1
        %v670 = vsel %vm641, %v667, %v669
        %v671 = vrot.slane %v366, 1
        %v672 = vsel %vm641, %v669, %v671
        %v689 = vsel %vm641, %v671, 0.0
        %vm690 = vcmp.ne.s32.totalorder %v560, 0
        %vm691 = vcmp.ne.s32.totalorder %v561, 0
        %vm692 = vcmp.ne.s32.totalorder %v562, 0
        %vm693 = vcmp.ne.s32.totalorder %v563, 0
        %vm694 = vcmp.ne.s32.totalorder %v564, 0
        %vm695 = vcmp.ne.s32.totalorder %v565, 0
        %vm696 = vcmp.ne.s32.totalorder %v566, 0
        %vm697 = vcmp.ne.s32.totalorder %v567, 0
        %vm698 = vcmp.ne.s32.totalorder %v568, 0
        %vm699 = vcmp.ne.s32.totalorder %v569, 0
        %vm700 = vcmp.ne.s32.totalorder %v570, 0
        %vm701 = vcmp.ne.s32.totalorder %v571, 0
        %vm702 = vcmp.ne.s32.totalorder %v572, 0
        %vm703 = vcmp.ne.s32.totalorder %v573, 0
        %vm704 = vcmp.ne.s32.totalorder %v574, 0
        %vm705 = vcmp.ne.s32.totalorder %v575, 0
        %v706 = vsel %vm690, 1, 0
        %v707 = vsel %vm691, 1, 0
        %v708 = vsel %vm692, 1, 0
        %v709 = vsel %vm693, 1, 0
        %v710 = vsel %vm694, 1, 0
        %v711 = vsel %vm695, 1, 0
        %v712 = vsel %vm696, 1, 0
        %v713 = vsel %vm697, 1, 0
        %v714 = vsel %vm698, 1, 0
        %v715 = vsel %vm699, 1, 0
        %v716 = vsel %vm700, 1, 0
        %v717 = vsel %vm701, 1, 0
        %v718 = vsel %vm702, 1, 0
        %v719 = vsel %vm703, 1, 0
        %v720 = vsel %vm704, 1, 0
        %v721 = vsel %vm705, 1, 0
        %vm722 = vcmp.eq.s32.totalorder %v706, 1
        %vm723 = vcmp.eq.s32.totalorder %v707, 1
        %vm724 = vcmp.eq.s32.totalorder %v708, 1
        %vm725 = vcmp.eq.s32.totalorder %v709, 1
        %vm726 = vcmp.eq.s32.totalorder %v710, 1
        %vm727 = vcmp.eq.s32.totalorder %v711, 1
        %vm728 = vcmp.eq.s32.totalorder %v712, 1
        %vm729 = vcmp.eq.s32.totalorder %v713, 1
        %vm730 = vcmp.eq.s32.totalorder %v714, 1
        %vm731 = vcmp.eq.s32.totalorder %v715, 1
        %vm732 = vcmp.eq.s32.totalorder %v716, 1
        %vm733 = vcmp.eq.s32.totalorder %v717, 1
        %vm734 = vcmp.eq.s32.totalorder %v718, 1
        %vm735 = vcmp.eq.s32.totalorder %v719, 1
        %vm736 = vcmp.eq.s32.totalorder %v720, 1
        %vm737 = vcmp.eq.s32.totalorder %v721, 1
        %v738 = vsel %vm722, %v640, 0.0
        %v739 = vsel %vm723, %v595, 0.0
        %v740 = vsel %vm724, %v597, 0.0
        %v741 = vsel %vm725, %v599, 0.0
        %v742 = vsel %vm726, %v601, 0.0
        %v743 = vsel %vm727, %v603, 0.0
        %v744 = vsel %vm728, %v605, 0.0
        %v745 = vsel %vm729, %v607, 0.0
        %v746 = vsel %vm730, %v609, 0.0
        %v747 = vsel %vm731, %v611, 0.0
        %v748 = vsel %vm732, %v613, 0.0
        %v749 = vsel %vm733, %v615, 0.0
        %v750 = vsel %vm734, %v617, 0.0
        %v751 = vsel %vm735, %v619, 0.0
        %v752 = vsel %vm736, %v621, 0.0
        %v753 = vsel %vm737, %v623, 0.0
        %vm754 = vcmp.ne.s32.totalorder %v560, 15
        %vm755 = vcmp.ne.s32.totalorder %v561, 15
        %vm756 = vcmp.ne.s32.totalorder %v562, 15
        %vm757 = vcmp.ne.s32.totalorder %v563, 15
        %vm758 = vcmp.ne.s32.totalorder %v564, 15
        %vm759 = vcmp.ne.s32.totalorder %v565, 15
        %vm760 = vcmp.ne.s32.totalorder %v566, 15
        %vm761 = vcmp.ne.s32.totalorder %v567, 15
        %vm762 = vcmp.ne.s32.totalorder %v568, 15
        %vm763 = vcmp.ne.s32.totalorder %v569, 15
        %vm764 = vcmp.ne.s32.totalorder %v570, 15
        %vm765 = vcmp.ne.s32.totalorder %v571, 15
        %vm766 = vcmp.ne.s32.totalorder %v572, 15
        %vm767 = vcmp.ne.s32.totalorder %v573, 15
        %vm768 = vcmp.ne.s32.totalorder %v574, 15
        %vm769 = vcmp.ne.s32.totalorder %v575, 15
        %v770 = vsel %vm754, 1, 0
        %v771 = vsel %vm755, 1, 0
        %v772 = vsel %vm756, 1, 0
        %v773 = vsel %vm757, 1, 0
        %v774 = vsel %vm758, 1, 0
        %v775 = vsel %vm759, 1, 0
        %v776 = vsel %vm760, 1, 0
        %v777 = vsel %vm761, 1, 0
        %v778 = vsel %vm762, 1, 0
        %v779 = vsel %vm763, 1, 0
        %v780 = vsel %vm764, 1, 0
        %v781 = vsel %vm765, 1, 0
        %v782 = vsel %vm766, 1, 0
        %v783 = vsel %vm767, 1, 0
        %v784 = vsel %vm768, 1, 0
        %v785 = vsel %vm769, 1, 0
        %vm786 = vcmp.eq.s32.totalorder %v770, 1
        %vm787 = vcmp.eq.s32.totalorder %v771, 1
        %vm788 = vcmp.eq.s32.totalorder %v772, 1
        %vm789 = vcmp.eq.s32.totalorder %v773, 1
        %vm790 = vcmp.eq.s32.totalorder %v774, 1
        %vm791 = vcmp.eq.s32.totalorder %v775, 1
        %vm792 = vcmp.eq.s32.totalorder %v776, 1
        %vm793 = vcmp.eq.s32.totalorder %v777, 1
        %vm794 = vcmp.eq.s32.totalorder %v778, 1
        %vm795 = vcmp.eq.s32.totalorder %v779, 1
        %vm796 = vcmp.eq.s32.totalorder %v780, 1
        %vm797 = vcmp.eq.s32.totalorder %v781, 1
        %vm798 = vcmp.eq.s32.totalorder %v782, 1
        %vm799 = vcmp.eq.s32.totalorder %v783, 1
        %vm800 = vcmp.eq.s32.totalorder %v784, 1
        %vm801 = vcmp.eq.s32.totalorder %v785, 1
        %v802 = vsel %vm786, %v644, 0.0
        %v803 = vsel %vm787, %v646, 0.0
        %v804 = vsel %vm788, %v648, 0.0
        %v805 = vsel %vm789, %v650, 0.0
        %v806 = vsel %vm790, %v652, 0.0
        %v807 = vsel %vm791, %v654, 0.0
        %v808 = vsel %vm792, %v656, 0.0
        %v809 = vsel %vm793, %v658, 0.0
        %v810 = vsel %vm794, %v660, 0.0
        %v811 = vsel %vm795, %v662, 0.0
        %v812 = vsel %vm796, %v664, 0.0
        %v813 = vsel %vm797, %v666, 0.0
        %v814 = vsel %vm798, %v668, 0.0
        %v815 = vsel %vm799, %v670, 0.0
        %v816 = vsel %vm800, %v672, 0.0
        %v817 = vsel %vm801, %v689, 0.0
        %818 = vrot.lane.b32.xlu0 %v351, 16
        %v819 = vpop.permute.xlu0 %818
        %820 = vrot.lane.b32.xlu0 %v352, 16
        %v821 = vpop.permute.xlu0 %820
        %822 = vrot.lane.b32.xlu0 %v353, 16
        %v823 = vpop.permute.xlu0 %822
        %824 = vrot.lane.b32.xlu0 %v354, 16
        %v825 = vpop.permute.xlu0 %824
        %826 = vrot.lane.b32.xlu0 %v355, 16
        %v827 = vpop.permute.xlu0 %826
        %828 = vrot.lane.b32.xlu0 %v356, 16
        %v829 = vpop.permute.xlu0 %828
        %830 = vrot.lane.b32.xlu0 %v357, 16
        %v831 = vpop.permute.xlu0 %830
        %832 = vrot.lane.b32.xlu0 %v358, 16
        %v833 = vpop.permute.xlu0 %832
        %834 = vrot.lane.b32.xlu0 %v359, 16
        %v835 = vpop.permute.xlu0 %834
        %836 = vrot.lane.b32.xlu0 %v360, 16
        %v837 = vpop.permute.xlu0 %836
        %838 = vrot.lane.b32.xlu0 %v361, 16
        %v839 = vpop.permute.xlu0 %838
        %840 = vrot.lane.b32.xlu0 %v362, 16
        %v841 = vpop.permute.xlu0 %840
        %842 = vrot.lane.b32.xlu0 %v363, 16
        %v843 = vpop.permute.xlu0 %842
        %844 = vrot.lane.b32.xlu0 %v364, 16
        %v845 = vpop.permute.xlu0 %844
        %846 = vrot.lane.b32.xlu0 %v365, 16
        %v847 = vpop.permute.xlu0 %846
        %848 = vrot.lane.b32.xlu0 %v366, 16
        %v849 = vpop.permute.xlu0 %848
        %882 = vrot.lane.b32.xlu0 %v802, 32
        %v883 = vpop.permute.xlu0 %882
        %884 = vrot.lane.b32.xlu0 %v803, 32
        %v885 = vpop.permute.xlu0 %884
        %886 = vrot.lane.b32.xlu0 %v804, 32
        %v887 = vpop.permute.xlu0 %886
        %888 = vrot.lane.b32.xlu0 %v805, 32
        %v889 = vpop.permute.xlu0 %888
        %890 = vrot.lane.b32.xlu0 %v806, 32
        %v891 = vpop.permute.xlu0 %890
        %892 = vrot.lane.b32.xlu0 %v807, 32
        %v893 = vpop.permute.xlu0 %892
        %894 = vrot.lane.b32.xlu0 %v808, 32
        %v895 = vpop.permute.xlu0 %894
        %896 = vrot.lane.b32.xlu0 %v809, 32
        %v897 = vpop.permute.xlu0 %896
        %898 = vrot.lane.b32.xlu0 %v810, 32
        %v899 = vpop.permute.xlu0 %898
        %900 = vrot.lane.b32.xlu0 %v811, 32
        %v901 = vpop.permute.xlu0 %900
        %902 = vrot.lane.b32.xlu0 %v812, 32
        %v903 = vpop.permute.xlu0 %902
        %904 = vrot.lane.b32.xlu0 %v813, 32
        %v905 = vpop.permute.xlu0 %904
        %906 = vrot.lane.b32.xlu0 %v814, 32
        %v907 = vpop.permute.xlu0 %906
        %908 = vrot.lane.b32.xlu0 %v815, 32
        %v909 = vpop.permute.xlu0 %908
        %910 = vrot.lane.b32.xlu0 %v816, 32
        %v911 = vpop.permute.xlu0 %910
        %912 = vrot.lane.b32.xlu0 %v817, 32
        %v913 = vpop.permute.xlu0 %912
        %vm930 = vcmask 130048
        %v931 = vsel %vm930, %v738, %v819
        %v932 = vsel %vm930, %v739, %v821
        %v933 = vsel %vm930, %v740, %v823
        %v934 = vsel %vm930, %v741, %v825
        %v935 = vsel %vm930, %v742, %v827
        %v936 = vsel %vm930, %v743, %v829
        %v937 = vsel %vm930, %v744, %v831
        %v938 = vsel %vm930, %v745, %v833
        %v939 = vsel %vm930, %v746, %v835
        %v940 = vsel %vm930, %v747, %v837
        %v941 = vsel %vm930, %v748, %v839
        %v942 = vsel %vm930, %v749, %v841
        %v943 = vsel %vm930, %v750, %v843
        %v944 = vsel %vm930, %v751, %v845
        %v945 = vsel %vm930, %v752, %v847
        %v946 = vsel %vm930, %v753, %v849
        %vm947 = vcmask 261120
        %v948 = vsel %vm947, %v931, %v883
        %v949 = vsel %vm947, %v932, %v885
        %v950 = vsel %vm947, %v933, %v887
        %v951 = vsel %vm947, %v934, %v889
        %v952 = vsel %vm947, %v935, %v891
        %v953 = vsel %vm947, %v936, %v893
        %v954 = vsel %vm947, %v937, %v895
        %v955 = vsel %vm947, %v938, %v897
        %v956 = vsel %vm947, %v939, %v899
        %v957 = vsel %vm947, %v940, %v901
        %v958 = vsel %vm947, %v941, %v903
        %v959 = vsel %vm947, %v942, %v905
        %v960 = vsel %vm947, %v943, %v907
        %v961 = vsel %vm947, %v944, %v909
        %v962 = vsel %vm947, %v945, %v911
        %v963 = vsel %vm947, %v946, %v913
        %v964 = vpack.c.bf16 %v949, %v948
        %v965 = vpack.c.bf16 %v951, %v950
        %v966 = vpack.c.bf16 %v953, %v952
        %v967 = vpack.c.bf16 %v955, %v954
        %v968 = vpack.c.bf16 %v957, %v956
        %v969 = vpack.c.bf16 %v959, %v958
        %v970 = vpack.c.bf16 %v961, %v960
        %v971 = vpack.c.bf16 %v963, %v962
        %v972 = vld [vmem:[%s1] sm:$0xff]
        %v973 = vld [vmem:[%s1 + $0x8] sm:$0xff]
        %v974 = vld [vmem:[%s1 + $0x10] sm:$0xff]
        %v975 = vld [vmem:[%s1 + $0x18] sm:$0xff]
        %v976 = vld [vmem:[%s1 + $0x20] sm:$0xff]
        %v977 = vld [vmem:[%s1 + $0x28] sm:$0xff]
        %v978 = vld [vmem:[%s2] sm:$0x3]
        %v980 = vlaneseq
        %v981 = vshrl.u32 %v980, 7
        %v982 = vsub.s32 0, %v981
        %v983 = vrot.slane %v978, %v982
        %v984 = vlaneseq
        %v985 = vshrl.u32 %v984, 7
        %v986 = vsub.s32 1, %v985
        %v987 = vrot.slane %v978, %v986
        %v996 = vunpack.c.l.b16 %v972
        %v997 = vunpack.c.h.b16 %v972
        %v998 = vunpack.c.l.b16 %v973
        %v999 = vunpack.c.h.b16 %v973
        %v1000 = vunpack.c.l.b16 %v974
        %v1001 = vunpack.c.h.b16 %v974
        %v1002 = vunpack.c.l.b16 %v975
        %v1003 = vunpack.c.h.b16 %v975
        %v1004 = vunpack.c.l.b16 %v976
        %v1005 = vunpack.c.h.b16 %v976
        %v1006 = vunpack.c.l.b16 %v977
        %v1007 = vunpack.c.h.b16 %v977
        %v1008 = vpack.c.b16 %v998, %v996
        %v1009 = vpack.c.b16 %v999, %v997
        %v1010 = vpack.c.b16 %v1002, %v1000
        %v1011 = vpack.c.b16 %v1003, %v1001
        %v1012 = vpack.c.b16 %v1006, %v1004
        %v1013 = vpack.c.b16 %v1007, %v1005
        %vm1020 = vcmask 392192
        %v1022 = vsel %vm1020, %v964, 0
        %v1025 = vsel %vm1020, %v965, 0
        %v1028 = vsel %vm1020, %v966, 0
        %v1031 = vsel %vm1020, %v967, 0
        %v1034 = vsel %vm1020, %v968, 0
        %v1037 = vsel %vm1020, %v969, 0
        %v1040 = vsel %vm1020, %v970, 0
        %v1043 = vsel %vm1020, %v971, 0
        %1045 = vmatprep.subr.bf16.mxu0 %v1009
        %1046 = vmatpush1.bf16.msra.mxu0 %v1008
        %1047 = vmatprep.subr.bf16.mxu0 %v1011
        %1048 = vmatpush1.bf16.msra.mxu0 %v1010
        %1049 = vmatprep.subr.bf16.mxu0 %v1013
        %1050 = vmatpush1.bf16.msra.mxu0 %v1012
        %1051 = vmatprep.subr.bf16.mxu0 0
        %1052 = vmatpush1.bf16.msra.mxu0 0
        %1053 = vmatprep.subr.bf16.mxu0 0
        %1054 = vmatpush1.bf16.msra.mxu0 0
        %1055 = vmatprep.subr.bf16.mxu0 0
        %1056 = vmatpush1.bf16.msra.mxu0 0
        %1057 = vmatprep.subr.bf16.mxu0 0
        %1058 = vmatpush1.bf16.msra.mxu0 0
        %1059 = vmatprep.subr.bf16.mxu0 0
        %1060 = vmatpush1.bf16.msra.mxu0 0
        %1061 = vmatprep.subr.bf16.mxu0 0
        %1062 = vmatpush1.bf16.msra.mxu0 0
        %1063 = vmatprep.subr.bf16.mxu0 0
        %1064 = vmatpush1.bf16.msra.mxu0 0
        %1065 = vmatprep.subr.bf16.mxu0 0
        %1066 = vmatpush1.bf16.msra.mxu0 0
        %1067 = vmatprep.subr.bf16.mxu0 0
        %1068 = vmatpush1.bf16.msra.mxu0 0
        %1069 = vmatprep.subr.bf16.mxu0 0
        %1070 = vmatpush1.bf16.msra.mxu0 0
        %1071 = vmatprep.subr.bf16.mxu0 0
        %1072 = vmatpush1.bf16.msra.mxu0 0
        %1073 = vmatprep.subr.bf16.mxu0 0
        %1074 = vmatpush1.bf16.msra.mxu0 0
        %1075 = vmatprep.subr.bf16.mxu0 0
        %1076 = vmatpush1.bf16.msra.mxu0 0
        %1077 = vmatprep.mubr.bf16.mxu0 0
        %1078 = vmatmul.mubr.bf16.gmra.mrb[0].mxu0 %v1022
        %v1079 = vpop.f32.mrb[0].mxu0
        %v1080 = vadd.f32 %v983, %v1079
        %v1081 = vpop.f32.mrb[0].mxu0
        %v1082 = vadd.f32 %v987, %v1081
        %v1083 = vpop.f32.mrb[0].mxu0
        %v1084 = vadd.f32 %v983, %v1083
        %v1085 = vpop.f32.mrb[0].mxu0
        %v1086 = vadd.f32 %v987, %v1085
        %1087 = vmatprep.mubr.bf16.mxu0 0
        %1088 = vmatmul.mubr.bf16.gmra.mrb[0].mxu0 %v1025
        %v1089 = vpop.f32.mrb[0].mxu0
        %v1090 = vadd.f32 %v983, %v1089
        %v1091 = vpop.f32.mrb[0].mxu0
        %v1092 = vadd.f32 %v987, %v1091
        %v1093 = vpop.f32.mrb[0].mxu0
        %v1094 = vadd.f32 %v983, %v1093
        %v1095 = vpop.f32.mrb[0].mxu0
        %v1096 = vadd.f32 %v987, %v1095
        %1097 = vmatprep.mubr.bf16.mxu0 0
        %1098 = vmatmul.mubr.bf16.gmra.mrb[0].mxu0 %v1028
        %v1099 = vpop.f32.mrb[0].mxu0
        %v1100 = vadd.f32 %v983, %v1099
        %v1101 = vpop.f32.mrb[0].mxu0
        %v1102 = vadd.f32 %v987, %v1101
        %v1103 = vpop.f32.mrb[0].mxu0
        %v1104 = vadd.f32 %v983, %v1103
        %v1105 = vpop.f32.mrb[0].mxu0
        %v1106 = vadd.f32 %v987, %v1105
        %1107 = vmatprep.mubr.bf16.mxu0 0
        %1108 = vmatmul.mubr.bf16.gmra.mrb[0].mxu0 %v1031
        %v1109 = vpop.f32.mrb[0].mxu0
        %v1110 = vadd.f32 %v983, %v1109
        %v1111 = vpop.f32.mrb[0].mxu0
        %v1112 = vadd.f32 %v987, %v1111
        %v1113 = vpop.f32.mrb[0].mxu0
        %v1114 = vadd.f32 %v983, %v1113
        %v1115 = vpop.f32.mrb[0].mxu0
        %v1116 = vadd.f32 %v987, %v1115
        %1117 = vmatprep.mubr.bf16.mxu0 0
        %1118 = vmatmul.mubr.bf16.gmra.mrb[0].mxu0 %v1034
        %v1119 = vpop.f32.mrb[0].mxu0
        %v1120 = vadd.f32 %v983, %v1119
        %v1121 = vpop.f32.mrb[0].mxu0
        %v1122 = vadd.f32 %v987, %v1121
        %v1123 = vpop.f32.mrb[0].mxu0
        %v1124 = vadd.f32 %v983, %v1123
        %v1125 = vpop.f32.mrb[0].mxu0
        %v1126 = vadd.f32 %v987, %v1125
        %1127 = vmatprep.mubr.bf16.mxu0 0
        %1128 = vmatmul.mubr.bf16.gmra.mrb[0].mxu0 %v1037
        %v1129 = vpop.f32.mrb[0].mxu0
        %v1130 = vadd.f32 %v983, %v1129
        %v1131 = vpop.f32.mrb[0].mxu0
        %v1132 = vadd.f32 %v987, %v1131
        %v1133 = vpop.f32.mrb[0].mxu0
        %v1134 = vadd.f32 %v983, %v1133
        %v1135 = vpop.f32.mrb[0].mxu0
        %v1136 = vadd.f32 %v987, %v1135
        %1137 = vmatprep.mubr.bf16.mxu0 0
        %1138 = vmatmul.mubr.bf16.gmra.mrb[0].mxu0 %v1040
        %v1139 = vpop.f32.mrb[0].mxu0
        %v1140 = vadd.f32 %v983, %v1139
        %v1141 = vpop.f32.mrb[0].mxu0
        %v1142 = vadd.f32 %v987, %v1141
        %v1143 = vpop.f32.mrb[0].mxu0
        %v1144 = vadd.f32 %v983, %v1143
        %v1145 = vpop.f32.mrb[0].mxu0
        %v1146 = vadd.f32 %v987, %v1145
        %1147 = vmatprep.mubr.bf16.mxu0 0
        %1148 = vmatmul.mubr.bf16.gmra.mrb[0].mxu0 %v1043
        %v1149 = vpop.f32.mrb[0].mxu0
        %v1150 = vadd.f32 %v983, %v1149
        %v1151 = vpop.f32.mrb[0].mxu0
        %v1152 = vadd.f32 %v987, %v1151
        %v1153 = vpop.f32.mrb[0].mxu0
        %v1154 = vadd.f32 %v983, %v1153
        %v1155 = vpop.f32.mrb[0].mxu0
        %v1156 = vadd.f32 %v987, %v1155
        %1157 = vdwg.mxu0
        %v1158 = vmax.f32 %v1080, 0.0
        %v1159 = vmax.f32 %v1082, 0.0
        %v1160 = vmax.f32 %v1084, 0.0
        %v1161 = vmax.f32 %v1086, 0.0
        %v1162 = vmax.f32 %v1090, 0.0
        %v1163 = vmax.f32 %v1092, 0.0
        %v1164 = vmax.f32 %v1094, 0.0
        %v1165 = vmax.f32 %v1096, 0.0
        %v1166 = vmax.f32 %v1100, 0.0
        %v1167 = vmax.f32 %v1102, 0.0
        %v1168 = vmax.f32 %v1104, 0.0
        %v1169 = vmax.f32 %v1106, 0.0
        %v1170 = vmax.f32 %v1110, 0.0
        %v1171 = vmax.f32 %v1112, 0.0
        %v1172 = vmax.f32 %v1114, 0.0
        %v1173 = vmax.f32 %v1116, 0.0
        %v1174 = vmax.f32 %v1120, 0.0
        %v1175 = vmax.f32 %v1122, 0.0
        %v1176 = vmax.f32 %v1124, 0.0
        %v1177 = vmax.f32 %v1126, 0.0
        %v1178 = vmax.f32 %v1130, 0.0
        %v1179 = vmax.f32 %v1132, 0.0
        %v1180 = vmax.f32 %v1134, 0.0
        %v1181 = vmax.f32 %v1136, 0.0
        %v1182 = vmax.f32 %v1140, 0.0
        %v1183 = vmax.f32 %v1142, 0.0
        %v1184 = vmax.f32 %v1144, 0.0
        %v1185 = vmax.f32 %v1146, 0.0
        %v1186 = vmax.f32 %v1150, 0.0
        %v1187 = vmax.f32 %v1152, 0.0
        %v1188 = vmax.f32 %v1154, 0.0
        %v1189 = vmax.f32 %v1156, 0.0
        %v1190 = vmax.f32 %v1158, %v1159
        %v1191 = vmax.f32 %v1160, %v1161
        %v1192 = vmax.f32 %v1162, %v1163
        %v1193 = vmax.f32 %v1164, %v1165
        %v1194 = vmax.f32 %v1166, %v1167
        %v1195 = vmax.f32 %v1168, %v1169
        %v1196 = vmax.f32 %v1170, %v1171
        %v1197 = vmax.f32 %v1172, %v1173
        %v1198 = vmax.f32 %v1174, %v1175
        %v1199 = vmax.f32 %v1176, %v1177
        %v1200 = vmax.f32 %v1178, %v1179
        %v1201 = vmax.f32 %v1180, %v1181
        %v1202 = vmax.f32 %v1182, %v1183
        %v1203 = vmax.f32 %v1184, %v1185
        %v1204 = vmax.f32 %v1186, %v1187
        %v1205 = vmax.f32 %v1188, %v1189
        %1206 = vst [vmem:[#allocation2] sm:$0xff] %v1190
        %1207 = vst [vmem:[#allocation2 + $0x8] sm:$0xff] %v1191
        %1208 = vst [vmem:[#allocation2 + $0x10] sm:$0xff] %v1192
        %1209 = vst [vmem:[#allocation2 + $0x18] sm:$0xff] %v1193
        %1210 = vst [vmem:[#allocation2 + $0x20] sm:$0xff] %v1194
        %1211 = vst [vmem:[#allocation2 + $0x28] sm:$0xff] %v1195
        %1212 = vst [vmem:[#allocation2 + $0x30] sm:$0xff] %v1196
        %1213 = vst [vmem:[#allocation2 + $0x38] sm:$0xff] %v1197
        %1214 = vst [vmem:[#allocation2 + $0x40] sm:$0xff] %v1198
        %1215 = vst [vmem:[#allocation2 + $0x48] sm:$0xff] %v1199
        %1216 = vst [vmem:[#allocation2 + $0x50] sm:$0xff] %v1200
        %1217 = vst [vmem:[#allocation2 + $0x58] sm:$0xff] %v1201
        %1218 = vst [vmem:[#allocation2 + $0x60] sm:$0xff] %v1202
        %1219 = vst [vmem:[#allocation2 + $0x68] sm:$0xff] %v1203
        %1220 = vst [vmem:[#allocation2 + $0x70] sm:$0xff] %v1204
        %1221 = vst [vmem:[#allocation2 + $0x78] sm:$0xff] %v1205
        %v1222 = vld [vmem:[#allocation2] ss:$2 sm:$0xff]
        %s1223 = scalar_lea.vmem [#allocation2], 16
        %v1224 = vld [vmem:[%s1223] ss:$2 sm:$0xff]
        %s1225 = scalar_lea.vmem [#allocation2], 32
        %v1226 = vld [vmem:[%s1225] ss:$2 sm:$0xff]
        %s1227 = scalar_lea.vmem [#allocation2], 48
        %v1228 = vld [vmem:[%s1227] ss:$2 sm:$0xff]
        %s1229 = scalar_lea.vmem [#allocation2], 64
        %v1230 = vld [vmem:[%s1229] ss:$2 sm:$0xff]
        %s1231 = scalar_lea.vmem [#allocation2], 80
        %v1232 = vld [vmem:[%s1231] ss:$2 sm:$0xff]
        %s1233 = scalar_lea.vmem [#allocation2], 96
        %v1234 = vld [vmem:[%s1233] ss:$2 sm:$0xff]
        %s1235 = scalar_lea.vmem [#allocation2], 112
        %v1236 = vld [vmem:[%s1235] ss:$2 sm:$0xff]
        %s1237 = scalar_lea.vmem [#allocation2], 1
        %v1238 = vld [vmem:[%s1237] ss:$2 sm:$0xff]
        %s1239 = scalar_lea.vmem [#allocation2], 17
        %v1240 = vld [vmem:[%s1239] ss:$2 sm:$0xff]
        %s1241 = scalar_lea.vmem [#allocation2], 33
        %v1242 = vld [vmem:[%s1241] ss:$2 sm:$0xff]
        %s1243 = scalar_lea.vmem [#allocation2], 49
        %v1244 = vld [vmem:[%s1243] ss:$2 sm:$0xff]
        %s1245 = scalar_lea.vmem [#allocation2], 65
        %v1246 = vld [vmem:[%s1245] ss:$2 sm:$0xff]
        %s1247 = scalar_lea.vmem [#allocation2], 81
        %v1248 = vld [vmem:[%s1247] ss:$2 sm:$0xff]
        %s1249 = scalar_lea.vmem [#allocation2], 97
        %v1250 = vld [vmem:[%s1249] ss:$2 sm:$0xff]
        %s1251 = scalar_lea.vmem [#allocation2], 113
        %v1252 = vld [vmem:[%s1251] ss:$2 sm:$0xff]
        %v1253 = vmax.f32 %v1222, %v1238
        %v1254 = vmax.f32 %v1224, %v1240
        %v1255 = vmax.f32 %v1226, %v1242
        %v1256 = vmax.f32 %v1228, %v1244
        %v1257 = vmax.f32 %v1230, %v1246
        %v1258 = vmax.f32 %v1232, %v1248
        %v1259 = vmax.f32 %v1234, %v1250
        %v1260 = vmax.f32 %v1236, %v1252
        %vm1261 = vcmp.lt.s32.totalorder %v368, 0
        %v1262 = vsub.s32 0, %v368
        %v1263 = vsel %vm1261, %v1262, %v368
        %v1264 = vshrl.u32 %v1263, 3
        %v1265 = vand.u32 %v1263, 7
        %v1266 = vsub.s32 0, %v1265
        %v1267 = vsel %vm1261, %v1266, %v1265
        %vm1268 = vcmp.lt.s32.totalorder %v369, 0
        %v1269 = vsub.s32 0, %v369
        %v1270 = vsel %vm1268, %v1269, %v369
        %v1271 = vshrl.u32 %v1270, 3
        %v1272 = vand.u32 %v1270, 7
        %v1273 = vsub.s32 0, %v1272
        %v1274 = vsel %vm1268, %v1273, %v1272
        %vm1275 = vcmp.lt.s32.totalorder %v370, 0
        %v1276 = vsub.s32 0, %v370
        %v1277 = vsel %vm1275, %v1276, %v370
        %v1278 = vshrl.u32 %v1277, 3
        %v1279 = vand.u32 %v1277, 7
        %v1280 = vsub.s32 0, %v1279
        %v1281 = vsel %vm1275, %v1280, %v1279
        %vm1282 = vcmp.lt.s32.totalorder %v371, 0
        %v1283 = vsub.s32 0, %v371
        %v1284 = vsel %vm1282, %v1283, %v371
        %v1285 = vshrl.u32 %v1284, 3
        %v1286 = vand.u32 %v1284, 7
        %v1287 = vsub.s32 0, %v1286
        %v1288 = vsel %vm1282, %v1287, %v1286
        %vm1289 = vcmp.lt.s32.totalorder %v372, 0
        %v1290 = vsub.s32 0, %v372
        %v1291 = vsel %vm1289, %v1290, %v372
        %v1292 = vshrl.u32 %v1291, 3
        %v1293 = vand.u32 %v1291, 7
        %v1294 = vsub.s32 0, %v1293
        %v1295 = vsel %vm1289, %v1294, %v1293
        %vm1296 = vcmp.lt.s32.totalorder %v373, 0
        %v1297 = vsub.s32 0, %v373
        %v1298 = vsel %vm1296, %v1297, %v373
        %v1299 = vshrl.u32 %v1298, 3
        %v1300 = vand.u32 %v1298, 7
        %v1301 = vsub.s32 0, %v1300
        %v1302 = vsel %vm1296, %v1301, %v1300
        %vm1303 = vcmp.lt.s32.totalorder %v374, 0
        %v1304 = vsub.s32 0, %v374
        %v1305 = vsel %vm1303, %v1304, %v374
        %v1306 = vshrl.u32 %v1305, 3
        %v1307 = vand.u32 %v1305, 7
        %v1308 = vsub.s32 0, %v1307
        %v1309 = vsel %vm1303, %v1308, %v1307
        %vm1310 = vcmp.lt.s32.totalorder %v375, 0
        %v1311 = vsub.s32 0, %v375
        %v1312 = vsel %vm1310, %v1311, %v375
        %v1313 = vshrl.u32 %v1312, 3
        %v1314 = vand.u32 %v1312, 7
        %v1315 = vsub.s32 0, %v1314
        %v1316 = vsel %vm1310, %v1315, %v1314
        %vm1317 = vcmp.ne.s32.totalorder %v1267, 0
        %vm1318 = vcmp.ne.s32.totalorder %v1274, 0
        %vm1319 = vcmp.ne.s32.totalorder %v1281, 0
        %vm1320 = vcmp.ne.s32.totalorder %v1288, 0
        %vm1321 = vcmp.ne.s32.totalorder %v1295, 0
        %vm1322 = vcmp.ne.s32.totalorder %v1302, 0
        %vm1323 = vcmp.ne.s32.totalorder %v1309, 0
        %vm1324 = vcmp.ne.s32.totalorder %v1316, 0
        %vm1325 = vcmp.lt.s32.totalorder %v1267, 0
        %vm1326 = vcmp.lt.s32.totalorder %v1274, 0
        %vm1327 = vcmp.lt.s32.totalorder %v1281, 0
        %vm1328 = vcmp.lt.s32.totalorder %v1288, 0
        %vm1329 = vcmp.lt.s32.totalorder %v1295, 0
        %vm1330 = vcmp.lt.s32.totalorder %v1302, 0
        %vm1331 = vcmp.lt.s32.totalorder %v1309, 0
        %vm1332 = vcmp.lt.s32.totalorder %v1316, 0
        %vm1333 = vmand %vm1325, %vm1317
        %vm1334 = vmand %vm1326, %vm1318
        %vm1335 = vmand %vm1327, %vm1319
        %vm1336 = vmand %vm1328, %vm1320
        %vm1337 = vmand %vm1329, %vm1321
        %vm1338 = vmand %vm1330, %vm1322
        %vm1339 = vmand %vm1331, %vm1323
        %vm1340 = vmand %vm1332, %vm1324
        %v1341 = vadd.s32 %v1267, 8
        %v1342 = vadd.s32 %v1274, 8
        %v1343 = vadd.s32 %v1281, 8
        %v1344 = vadd.s32 %v1288, 8
        %v1345 = vadd.s32 %v1295, 8
        %v1346 = vadd.s32 %v1302, 8
        %v1347 = vadd.s32 %v1309, 8
        %v1348 = vadd.s32 %v1316, 8
        %v1349 = vsel %vm1333, %v1341, %v1267
        %v1350 = vsel %vm1334, %v1342, %v1274
        %v1351 = vsel %vm1335, %v1343, %v1281
        %v1352 = vsel %vm1336, %v1344, %v1288
        %v1353 = vsel %vm1337, %v1345, %v1295
        %v1354 = vsel %vm1338, %v1346, %v1302
        %v1355 = vsel %vm1339, %v1347, %v1309
        %v1356 = vsel %vm1340, %v1348, %v1316
        %v1365 = vrot.slane %v1253, 7
        %v1366 = vrot.slane %v1254, 7
        %v1367 = vsel %vm592, %v1365, %v1366
        %v1368 = vrot.slane %v1255, 7
        %v1369 = vsel %vm592, %v1366, %v1368
        %v1370 = vrot.slane %v1256, 7
        %v1371 = vsel %vm592, %v1368, %v1370
        %v1372 = vrot.slane %v1257, 7
        %v1373 = vsel %vm592, %v1370, %v1372
        %v1374 = vrot.slane %v1258, 7
        %v1375 = vsel %vm592, %v1372, %v1374
        %v1376 = vrot.slane %v1259, 7
        %v1377 = vsel %vm592, %v1374, %v1376
        %v1378 = vrot.slane %v1260, 7
        %v1379 = vsel %vm592, %v1376, %v1378
        %v1388 = vsel %vm592, 0.0, %v1365
        %v1389 = vrot.slane %v1253, 1
        %v1390 = vrot.slane %v1254, 1
        %v1391 = vsel %vm641, %v1389, %v1390
        %v1392 = vrot.slane %v1255, 1
        %v1393 = vsel %vm641, %v1390, %v1392
        %v1394 = vrot.slane %v1256, 1
        %v1395 = vsel %vm641, %v1392, %v1394
        %v1396 = vrot.slane %v1257, 1
        %v1397 = vsel %vm641, %v1394, %v1396
        %v1398 = vrot.slane %v1258, 1
        %v1399 = vsel %vm641, %v1396, %v1398
        %v1400 = vrot.slane %v1259, 1
        %v1401 = vsel %vm641, %v1398, %v1400
        %v1402 = vrot.slane %v1260, 1
        %v1403 = vsel %vm641, %v1400, %v1402
        %v1412 = vsel %vm641, %v1402, 0.0
        %vm1413 = vcmp.ne.s32.totalorder %v1349, 0
        %vm1414 = vcmp.ne.s32.totalorder %v1350, 0
        %vm1415 = vcmp.ne.s32.totalorder %v1351, 0
        %vm1416 = vcmp.ne.s32.totalorder %v1352, 0
        %vm1417 = vcmp.ne.s32.totalorder %v1353, 0
        %vm1418 = vcmp.ne.s32.totalorder %v1354, 0
        %vm1419 = vcmp.ne.s32.totalorder %v1355, 0
        %vm1420 = vcmp.ne.s32.totalorder %v1356, 0
        %v1421 = vsel %vm1413, 1, 0
        %v1422 = vsel %vm1414, 1, 0
        %v1423 = vsel %vm1415, 1, 0
        %v1424 = vsel %vm1416, 1, 0
        %v1425 = vsel %vm1417, 1, 0
        %v1426 = vsel %vm1418, 1, 0
        %v1427 = vsel %vm1419, 1, 0
        %v1428 = vsel %vm1420, 1, 0
        %vm1429 = vcmp.eq.s32.totalorder %v1421, 1
        %vm1430 = vcmp.eq.s32.totalorder %v1422, 1
        %vm1431 = vcmp.eq.s32.totalorder %v1423, 1
        %vm1432 = vcmp.eq.s32.totalorder %v1424, 1
        %vm1433 = vcmp.eq.s32.totalorder %v1425, 1
        %vm1434 = vcmp.eq.s32.totalorder %v1426, 1
        %vm1435 = vcmp.eq.s32.totalorder %v1427, 1
        %vm1436 = vcmp.eq.s32.totalorder %v1428, 1
        %v1437 = vsel %vm1429, %v1388, 0.0
        %v1438 = vsel %vm1430, %v1367, 0.0
        %v1439 = vsel %vm1431, %v1369, 0.0
        %v1440 = vsel %vm1432, %v1371, 0.0
        %v1441 = vsel %vm1433, %v1373, 0.0
        %v1442 = vsel %vm1434, %v1375, 0.0
        %v1443 = vsel %vm1435, %v1377, 0.0
        %v1444 = vsel %vm1436, %v1379, 0.0
        %vm1445 = vcmp.ne.s32.totalorder %v1349, 7
        %vm1446 = vcmp.ne.s32.totalorder %v1350, 7
        %vm1447 = vcmp.ne.s32.totalorder %v1351, 7
        %vm1448 = vcmp.ne.s32.totalorder %v1352, 7
        %vm1449 = vcmp.ne.s32.totalorder %v1353, 7
        %vm1450 = vcmp.ne.s32.totalorder %v1354, 7
        %vm1451 = vcmp.ne.s32.totalorder %v1355, 7
        %vm1452 = vcmp.ne.s32.totalorder %v1356, 7
        %v1453 = vsel %vm1445, 1, 0
        %v1454 = vsel %vm1446, 1, 0
        %v1455 = vsel %vm1447, 1, 0
        %v1456 = vsel %vm1448, 1, 0
        %v1457 = vsel %vm1449, 1, 0
        %v1458 = vsel %vm1450, 1, 0
        %v1459 = vsel %vm1451, 1, 0
        %v1460 = vsel %vm1452, 1, 0
        %vm1461 = vcmp.eq.s32.totalorder %v1453, 1
        %vm1462 = vcmp.eq.s32.totalorder %v1454, 1
        %vm1463 = vcmp.eq.s32.totalorder %v1455, 1
        %vm1464 = vcmp.eq.s32.totalorder %v1456, 1
        %vm1465 = vcmp.eq.s32.totalorder %v1457, 1
        %vm1466 = vcmp.eq.s32.totalorder %v1458, 1
        %vm1467 = vcmp.eq.s32.totalorder %v1459, 1
        %vm1468 = vcmp.eq.s32.totalorder %v1460, 1
        %v1469 = vsel %vm1461, %v1391, 0.0
        %v1470 = vsel %vm1462, %v1393, 0.0
        %v1471 = vsel %vm1463, %v1395, 0.0
        %v1472 = vsel %vm1464, %v1397, 0.0
        %v1473 = vsel %vm1465, %v1399, 0.0
        %v1474 = vsel %vm1466, %v1401, 0.0
        %v1475 = vsel %vm1467, %v1403, 0.0
        %v1476 = vsel %vm1468, %v1412, 0.0
        %v1477 = vpack.c.bf16 %v1438, %v1437
        %v1478 = vpack.c.bf16 %v1254, %v1253
        %v1479 = vpack.c.bf16 %v1470, %v1469
        %v1480 = vpack.c.bf16 %v1440, %v1439
        %v1481 = vpack.c.bf16 %v1256, %v1255
        %v1482 = vpack.c.bf16 %v1472, %v1471
        %v1483 = vpack.c.bf16 %v1442, %v1441
        %v1484 = vpack.c.bf16 %v1258, %v1257
        %v1485 = vpack.c.bf16 %v1474, %v1473
        %v1486 = vpack.c.bf16 %v1444, %v1443
        %v1487 = vpack.c.bf16 %v1260, %v1259
        %v1488 = vpack.c.bf16 %v1476, %v1475
        %v1489 = vld [vmem:[%s3] sm:$0xff]
        %v1490 = vld [vmem:[%s3 + $0x8] sm:$0xff]
        %v1491 = vld [vmem:[%s3 + $0x10] sm:$0xff]
        %v1492 = vld [vmem:[%s3 + $0x18] sm:$0xff]
        %v1493 = vld [vmem:[%s3 + $0x20] sm:$0xff]
        %v1494 = vld [vmem:[%s3 + $0x28] sm:$0xff]
        %v1495 = vld [vmem:[%s3 + $0x30] sm:$0xff]
        %v1496 = vld [vmem:[%s3 + $0x38] sm:$0xff]
        %v1497 = vld [vmem:[%s3 + $0x40] sm:$0xff]
        %v1498 = vld [vmem:[%s3 + $0x48] sm:$0xff]
        %v1499 = vld [vmem:[%s3 + $0x50] sm:$0xff]
        %v1500 = vld [vmem:[%s3 + $0x58] sm:$0xff]
        %v1501 = vld [vmem:[%s3 + $0x60] sm:$0xff]
        %v1502 = vld [vmem:[%s3 + $0x68] sm:$0xff]
        %v1503 = vld [vmem:[%s3 + $0x70] sm:$0xff]
        %v1504 = vld [vmem:[%s3 + $0x78] sm:$0xff]
        %v1505 = vld [vmem:[%s3 + $0x80] sm:$0xff]
        %v1506 = vld [vmem:[%s3 + $0x88] sm:$0xff]
        %v1507 = vld [vmem:[%s3 + $0x90] sm:$0xff]
        %v1508 = vld [vmem:[%s3 + $0x98] sm:$0xff]
        %v1509 = vld [vmem:[%s3 + $0xa0] sm:$0xff]
        %v1510 = vld [vmem:[%s3 + $0xa8] sm:$0xff]
        %v1511 = vld [vmem:[%s3 + $0xb0] sm:$0xff]
        %v1512 = vld [vmem:[%s3 + $0xb8] sm:$0xff]
        %v1513 = vld [vmem:[%s3 + $0xc0] sm:$0xff]
        %v1514 = vld [vmem:[%s3 + $0xc8] sm:$0xff]
        %v1515 = vld [vmem:[%s3 + $0xd0] sm:$0xff]
        %v1516 = vld [vmem:[%s3 + $0xd8] sm:$0xff]
        %v1517 = vld [vmem:[%s3 + $0xe0] sm:$0xff]
        %v1518 = vld [vmem:[%s3 + $0xe8] sm:$0xff]
        %v1519 = vld [vmem:[%s3 + $0xf0] sm:$0xff]
        %v1520 = vld [vmem:[%s3 + $0xf8] sm:$0xff]
        %v1521 = vld [vmem:[%s3 + $0x100] sm:$0xff]
        %v1522 = vld [vmem:[%s3 + $0x108] sm:$0xff]
        %v1523 = vld [vmem:[%s3 + $0x110] sm:$0xff]
        %v1524 = vld [vmem:[%s3 + $0x118] sm:$0xff]
        %v1525 = vld [vmem:[%s3 + $0x120] sm:$0xff]
        %v1526 = vld [vmem:[%s3 + $0x128] sm:$0xff]
        %v1527 = vld [vmem:[%s3 + $0x130] sm:$0xff]
        %v1528 = vld [vmem:[%s3 + $0x138] sm:$0xff]
        %v1529 = vld [vmem:[%s3 + $0x140] sm:$0xff]
        %v1530 = vld [vmem:[%s3 + $0x148] sm:$0xff]
        %v1531 = vld [vmem:[%s3 + $0x150] sm:$0xff]
        %v1532 = vld [vmem:[%s3 + $0x158] sm:$0xff]
        %v1533 = vld [vmem:[%s3 + $0x160] sm:$0xff]
        %v1534 = vld [vmem:[%s3 + $0x168] sm:$0xff]
        %v1535 = vld [vmem:[%s3 + $0x170] sm:$0xff]
        %v1536 = vld [vmem:[%s3 + $0x178] sm:$0xff]
        %v1537 = vld [vmem:[%s4] sm:$0x3]
        %v1539 = vlaneseq
        %v1540 = vshrl.u32 %v1539, 7
        %v1541 = vsub.s32 0, %v1540
        %v1542 = vrot.slane %v1537, %v1541
        %v1543 = vlaneseq
        %v1544 = vshrl.u32 %v1543, 7
        %v1545 = vsub.s32 1, %v1544
        %v1546 = vrot.slane %v1537, %v1545
        %v1597 = vunpack.c.l.b16 %v1489
        %v1598 = vunpack.c.h.b16 %v1489
        %v1599 = vunpack.c.l.b16 %v1490
        %v1600 = vunpack.c.h.b16 %v1490
        %v1601 = vunpack.c.l.b16 %v1491
        %v1602 = vunpack.c.h.b16 %v1491
        %v1603 = vunpack.c.l.b16 %v1492
        %v1604 = vunpack.c.h.b16 %v1492
        %v1605 = vunpack.c.l.b16 %v1493
        %v1606 = vunpack.c.h.b16 %v1493
        %v1607 = vunpack.c.l.b16 %v1494
        %v1608 = vunpack.c.h.b16 %v1494
        %v1609 = vunpack.c.l.b16 %v1495
        %v1610 = vunpack.c.h.b16 %v1495
        %v1611 = vunpack.c.l.b16 %v1496
        %v1612 = vunpack.c.h.b16 %v1496
        %v1613 = vunpack.c.l.b16 %v1497
        %v1614 = vunpack.c.h.b16 %v1497
        %v1615 = vunpack.c.l.b16 %v1498
        %v1616 = vunpack.c.h.b16 %v1498
        %v1617 = vunpack.c.l.b16 %v1499
        %v1618 = vunpack.c.h.b16 %v1499
        %v1619 = vunpack.c.l.b16 %v1500
        %v1620 = vunpack.c.h.b16 %v1500
        %v1621 = vunpack.c.l.b16 %v1501
        %v1622 = vunpack.c.h.b16 %v1501
        %v1623 = vunpack.c.l.b16 %v1502
        %v1624 = vunpack.c.h.b16 %v1502
        %v1625 = vunpack.c.l.b16 %v1503
        %v1626 = vunpack.c.h.b16 %v1503
        %v1627 = vunpack.c.l.b16 %v1504
        %v1628 = vunpack.c.h.b16 %v1504
        %v1629 = vunpack.c.l.b16 %v1505
        %v1630 = vunpack.c.h.b16 %v1505
        %v1631 = vunpack.c.l.b16 %v1506
        %v1632 = vunpack.c.h.b16 %v1506
        %v1633 = vunpack.c.l.b16 %v1507
        %v1634 = vunpack.c.h.b16 %v1507
        %v1635 = vunpack.c.l.b16 %v1508
        %v1636 = vunpack.c.h.b16 %v1508
        %v1637 = vunpack.c.l.b16 %v1509
        %v1638 = vunpack.c.h.b16 %v1509
        %v1639 = vunpack.c.l.b16 %v1510
        %v1640 = vunpack.c.h.b16 %v1510
        %v1641 = vunpack.c.l.b16 %v1511
        %v1642 = vunpack.c.h.b16 %v1511
        %v1643 = vunpack.c.l.b16 %v1512
        %v1644 = vunpack.c.h.b16 %v1512
        %v1645 = vunpack.c.l.b16 %v1513
        %v1646 = vunpack.c.h.b16 %v1513
        %v1647 = vunpack.c.l.b16 %v1514
        %v1648 = vunpack.c.h.b16 %v1514
        %v1649 = vunpack.c.l.b16 %v1515
        %v1650 = vunpack.c.h.b16 %v1515
        %v1651 = vunpack.c.l.b16 %v1516
        %v1652 = vunpack.c.h.b16 %v1516
        %v1653 = vunpack.c.l.b16 %v1517
        %v1654 = vunpack.c.h.b16 %v1517
        %v1655 = vunpack.c.l.b16 %v1518
        %v1656 = vunpack.c.h.b16 %v1518
        %v1657 = vunpack.c.l.b16 %v1519
        %v1658 = vunpack.c.h.b16 %v1519
        %v1659 = vunpack.c.l.b16 %v1520
        %v1660 = vunpack.c.h.b16 %v1520
        %v1661 = vunpack.c.l.b16 %v1521
        %v1662 = vunpack.c.h.b16 %v1521
        %v1663 = vunpack.c.l.b16 %v1522
        %v1664 = vunpack.c.h.b16 %v1522
        %v1665 = vunpack.c.l.b16 %v1523
        %v1666 = vunpack.c.h.b16 %v1523
        %v1667 = vunpack.c.l.b16 %v1524
        %v1668 = vunpack.c.h.b16 %v1524
        %v1669 = vunpack.c.l.b16 %v1525
        %v1670 = vunpack.c.h.b16 %v1525
        %v1671 = vunpack.c.l.b16 %v1526
        %v1672 = vunpack.c.h.b16 %v1526
        %v1673 = vunpack.c.l.b16 %v1527
        %v1674 = vunpack.c.h.b16 %v1527
        %v1675 = vunpack.c.l.b16 %v1528
        %v1676 = vunpack.c.h.b16 %v1528
        %v1677 = vunpack.c.l.b16 %v1529
        %v1678 = vunpack.c.h.b16 %v1529
        %v1679 = vunpack.c.l.b16 %v1530
        %v1680 = vunpack.c.h.b16 %v1530
        %v1681 = vunpack.c.l.b16 %v1531
        %v1682 = vunpack.c.h.b16 %v1531
        %v1683 = vunpack.c.l.b16 %v1532
        %v1684 = vunpack.c.h.b16 %v1532
        %v1685 = vunpack.c.l.b16 %v1533
        %v1686 = vunpack.c.h.b16 %v1533
        %v1687 = vunpack.c.l.b16 %v1534
        %v1688 = vunpack.c.h.b16 %v1534
        %v1689 = vunpack.c.l.b16 %v1535
        %v1690 = vunpack.c.h.b16 %v1535
        %v1691 = vunpack.c.l.b16 %v1536
        %v1692 = vunpack.c.h.b16 %v1536
        %v1693 = vpack.c.b16 %v1599, %v1597
        %v1694 = vpack.c.b16 %v1600, %v1598
        %v1695 = vpack.c.b16 %v1603, %v1601
        %v1696 = vpack.c.b16 %v1604, %v1602
        %v1697 = vpack.c.b16 %v1607, %v1605
        %v1698 = vpack.c.b16 %v1608, %v1606
        %v1699 = vpack.c.b16 %v1611, %v1609
        %v1700 = vpack.c.b16 %v1612, %v1610
        %v1701 = vpack.c.b16 %v1615, %v1613
        %v1702 = vpack.c.b16 %v1616, %v1614
        %v1703 = vpack.c.b16 %v1619, %v1617
        %v1704 = vpack.c.b16 %v1620, %v1618
        %v1705 = vpack.c.b16 %v1623, %v1621
        %v1706 = vpack.c.b16 %v1624, %v1622
        %v1707 = vpack.c.b16 %v1627, %v1625
        %v1708 = vpack.c.b16 %v1628, %v1626
        %v1709 = vpack.c.b16 %v1631, %v1629
        %v1710 = vpack.c.b16 %v1632, %v1630
        %v1711 = vpack.c.b16 %v1635, %v1633
        %v1712 = vpack.c.b16 %v1636, %v1634
        %v1713 = vpack.c.b16 %v1639, %v1637
        %v1714 = vpack.c.b16 %v1640, %v1638
        %v1715 = vpack.c.b16 %v1643, %v1641
        %v1716 = vpack.c.b16 %v1644, %v1642
        %v1717 = vpack.c.b16 %v1647, %v1645
        %v1718 = vpack.c.b16 %v1648, %v1646
        %v1719 = vpack.c.b16 %v1651, %v1649
        %v1720 = vpack.c.b16 %v1652, %v1650
        %v1721 = vpack.c.b16 %v1655, %v1653
        %v1722 = vpack.c.b16 %v1656, %v1654
        %v1723 = vpack.c.b16 %v1659, %v1657
        %v1724 = vpack.c.b16 %v1660, %v1658
        %v1725 = vpack.c.b16 %v1663, %v1661
        %v1726 = vpack.c.b16 %v1664, %v1662
        %v1727 = vpack.c.b16 %v1667, %v1665
        %v1728 = vpack.c.b16 %v1668, %v1666
        %v1729 = vpack.c.b16 %v1671, %v1669
        %v1730 = vpack.c.b16 %v1672, %v1670
        %v1731 = vpack.c.b16 %v1675, %v1673
        %v1732 = vpack.c.b16 %v1676, %v1674
        %v1733 = vpack.c.b16 %v1679, %v1677
        %v1734 = vpack.c.b16 %v1680, %v1678
        %v1735 = vpack.c.b16 %v1683, %v1681
        %v1736 = vpack.c.b16 %v1684, %v1682
        %v1737 = vpack.c.b16 %v1687, %v1685
        %v1738 = vpack.c.b16 %v1688, %v1686
        %v1739 = vpack.c.b16 %v1691, %v1689
        %v1740 = vpack.c.b16 %v1692, %v1690
        %1789 = vmatprep.subr.bf16.mxu0 %v1694
        %1790 = vmatpush1.bf16.msra.mxu0 %v1693
        %1791 = vmatprep.subr.bf16.mxu0 %v1696
        %1792 = vmatpush1.bf16.msra.mxu0 %v1695
        %1793 = vmatprep.subr.bf16.mxu0 %v1698
        %1794 = vmatpush1.bf16.msra.mxu0 %v1697
        %1795 = vmatprep.subr.bf16.mxu0 %v1700
        %1796 = vmatpush1.bf16.msra.mxu0 %v1699
        %1797 = vmatprep.subr.bf16.mxu0 %v1702
        %1798 = vmatpush1.bf16.msra.mxu0 %v1701
        %1799 = vmatprep.subr.bf16.mxu0 %v1704
        %1800 = vmatpush1.bf16.msra.mxu0 %v1703
        %1801 = vmatprep.subr.bf16.mxu0 %v1706
        %1802 = vmatpush1.bf16.msra.mxu0 %v1705
        %1803 = vmatprep.subr.bf16.mxu0 %v1708
        %1804 = vmatpush1.bf16.msra.mxu0 %v1707
        %1805 = vmatprep.subr.bf16.mxu0 %v1710
        %1806 = vmatpush1.bf16.msra.mxu0 %v1709
        %1807 = vmatprep.subr.bf16.mxu0 %v1712
        %1808 = vmatpush1.bf16.msra.mxu0 %v1711
        %1809 = vmatprep.subr.bf16.mxu0 %v1714
        %1810 = vmatpush1.bf16.msra.mxu0 %v1713
        %1811 = vmatprep.subr.bf16.mxu0 %v1716
        %1812 = vmatpush1.bf16.msra.mxu0 %v1715
        %1813 = vmatprep.subr.bf16.mxu0 %v1718
        %1814 = vmatpush1.bf16.msra.mxu0 %v1717
        %1815 = vmatprep.subr.bf16.mxu0 %v1720
        %1816 = vmatpush1.bf16.msra.mxu0 %v1719
        %1817 = vmatprep.subr.bf16.mxu0 %v1722
        %1818 = vmatpush1.bf16.msra.mxu0 %v1721
        %1819 = vmatprep.subr.bf16.mxu0 %v1724
        %1820 = vmatpush1.bf16.msra.mxu0 %v1723
        %1821 = vmatprep.mubr.bf16.mxu0 %v1478
        %1822 = vmatmul.mubr.bf16.gmra.mrb[0].mxu0 %v1477
        %v1823 = vpop.f32.mrb[0].mxu0
        %v1824 = vadd.f32 %v1542, %v1823
        %v1825 = vpop.f32.mrb[0].mxu0
        %v1826 = vadd.f32 %v1546, %v1825
        %v1827 = vpop.f32.mrb[0].mxu0
        %v1828 = vadd.f32 %v1542, %v1827
        %v1829 = vpop.f32.mrb[0].mxu0
        %v1830 = vadd.f32 %v1546, %v1829
        %1831 = vmatprep.mubr.bf16.mxu0 %v1481
        %1832 = vmatmul.mubr.bf16.gmra.mrb[0].mxu0 %v1480
        %v1833 = vpop.f32.mrb[0].mxu0
        %v1834 = vadd.f32 %v1542, %v1833
        %v1835 = vpop.f32.mrb[0].mxu0
        %v1836 = vadd.f32 %v1546, %v1835
        %v1837 = vpop.f32.mrb[0].mxu0
        %v1838 = vadd.f32 %v1542, %v1837
        %v1839 = vpop.f32.mrb[0].mxu0
        %v1840 = vadd.f32 %v1546, %v1839
        %1841 = vmatprep.mubr.bf16.mxu0 %v1484
        %1842 = vmatmul.mubr.bf16.gmra.mrb[0].mxu0 %v1483
        %v1843 = vpop.f32.mrb[0].mxu0
        %v1844 = vadd.f32 %v1542, %v1843
        %v1845 = vpop.f32.mrb[0].mxu0
        %v1846 = vadd.f32 %v1546, %v1845
        %v1847 = vpop.f32.mrb[0].mxu0
        %v1848 = vadd.f32 %v1542, %v1847
        %v1849 = vpop.f32.mrb[0].mxu0
        %v1850 = vadd.f32 %v1546, %v1849
        %1851 = vmatprep.mubr.bf16.mxu0 %v1487
        %1852 = vmatmul.mubr.bf16.gmra.mrb[0].mxu0 %v1486
        %v1853 = vpop.f32.mrb[0].mxu0
        %v1854 = vadd.f32 %v1542, %v1853
        %v1855 = vpop.f32.mrb[0].mxu0
        %v1856 = vadd.f32 %v1546, %v1855
        %v1857 = vpop.f32.mrb[0].mxu0
        %v1858 = vadd.f32 %v1542, %v1857
        %v1859 = vpop.f32.mrb[0].mxu0
        %v1860 = vadd.f32 %v1546, %v1859
        %1861 = vdwg.mxu0
        %1862 = vmatprep.subr.bf16.mxu0 %v1726
        %1863 = vmatpush1.bf16.msra.mxu0 %v1725
        %1864 = vmatprep.subr.bf16.mxu0 %v1728
        %1865 = vmatpush1.bf16.msra.mxu0 %v1727
        %1866 = vmatprep.subr.bf16.mxu0 %v1730
        %1867 = vmatpush1.bf16.msra.mxu0 %v1729
        %1868 = vmatprep.subr.bf16.mxu0 %v1732
        %1869 = vmatpush1.bf16.msra.mxu0 %v1731
        %1870 = vmatprep.subr.bf16.mxu0 %v1734
        %1871 = vmatpush1.bf16.msra.mxu0 %v1733
        %1872 = vmatprep.subr.bf16.mxu0 %v1736
        %1873 = vmatpush1.bf16.msra.mxu0 %v1735
        %1874 = vmatprep.subr.bf16.mxu0 %v1738
        %1875 = vmatpush1.bf16.msra.mxu0 %v1737
        %1876 = vmatprep.subr.bf16.mxu0 %v1740
        %1877 = vmatpush1.bf16.msra.mxu0 %v1739
        %1878 = vmatprep.subr.bf16.mxu0 0
        %1879 = vmatpush1.bf16.msra.mxu0 0
        %1880 = vmatprep.subr.bf16.mxu0 0
        %1881 = vmatpush1.bf16.msra.mxu0 0
        %1882 = vmatprep.subr.bf16.mxu0 0
        %1883 = vmatpush1.bf16.msra.mxu0 0
        %1884 = vmatprep.subr.bf16.mxu0 0
        %1885 = vmatpush1.bf16.msra.mxu0 0
        %1886 = vmatprep.subr.bf16.mxu0 0
        %1887 = vmatpush1.bf16.msra.mxu0 0
        %1888 = vmatprep.subr.bf16.mxu0 0
        %1889 = vmatpush1.bf16.msra.mxu0 0
        %1890 = vmatprep.subr.bf16.mxu0 0
        %1891 = vmatpush1.bf16.msra.mxu0 0
        %1892 = vmatprep.subr.bf16.mxu0 0
        %1893 = vmatpush1.bf16.msra.mxu0 0
        %1894 = vmatprep.mubr.bf16.mxu0 0
        %1895 = vmatmul.mubr.bf16.gmra.mrb[0].mxu0 %v1479
        %v1896 = vpop.f32.mrb[0].mxu0
        %v1897 = vadd.f32 %v1824, %v1896
        %v1898 = vpop.f32.mrb[0].mxu0
        %v1899 = vadd.f32 %v1826, %v1898
        %v1900 = vpop.f32.mrb[0].mxu0
        %v1901 = vadd.f32 %v1828, %v1900
        %v1902 = vpop.f32.mrb[0].mxu0
        %v1903 = vadd.f32 %v1830, %v1902
        %1904 = vmatprep.mubr.bf16.mxu0 0
        %1905 = vmatmul.mubr.bf16.gmra.mrb[0].mxu0 %v1482
        %v1906 = vpop.f32.mrb[0].mxu0
        %v1907 = vadd.f32 %v1834, %v1906
        %v1908 = vpop.f32.mrb[0].mxu0
        %v1909 = vadd.f32 %v1836, %v1908
        %v1910 = vpop.f32.mrb[0].mxu0
        %v1911 = vadd.f32 %v1838, %v1910
        %v1912 = vpop.f32.mrb[0].mxu0
        %v1913 = vadd.f32 %v1840, %v1912
        %1914 = vmatprep.mubr.bf16.mxu0 0
        %1915 = vmatmul.mubr.bf16.gmra.mrb[0].mxu0 %v1485
        %v1916 = vpop.f32.mrb[0].mxu0
        %v1917 = vadd.f32 %v1844, %v1916
        %v1918 = vpop.f32.mrb[0].mxu0
        %v1919 = vadd.f32 %v1846, %v1918
        %v1920 = vpop.f32.mrb[0].mxu0
        %v1921 = vadd.f32 %v1848, %v1920
        %v1922 = vpop.f32.mrb[0].mxu0
        %v1923 = vadd.f32 %v1850, %v1922
        %1924 = vmatprep.mubr.bf16.mxu0 0
        %1925 = vmatmul.mubr.bf16.gmra.mrb[0].mxu0 %v1488
        %v1926 = vpop.f32.mrb[0].mxu0
        %v1927 = vadd.f32 %v1854, %v1926
        %v1928 = vpop.f32.mrb[0].mxu0
        %v1929 = vadd.f32 %v1856, %v1928
        %v1930 = vpop.f32.mrb[0].mxu0
        %v1931 = vadd.f32 %v1858, %v1930
        %v1932 = vpop.f32.mrb[0].mxu0
        %v1933 = vadd.f32 %v1860, %v1932
        %1934 = vdwg.mxu0
        %v1935 = vmax.f32 %v1897, 0.0
        %v1936 = vmax.f32 %v1899, 0.0
        %v1937 = vmax.f32 %v1901, 0.0
        %v1938 = vmax.f32 %v1903, 0.0
        %v1939 = vmax.f32 %v1907, 0.0
        %v1940 = vmax.f32 %v1909, 0.0
        %v1941 = vmax.f32 %v1911, 0.0
        %v1942 = vmax.f32 %v1913, 0.0
        %v1943 = vmax.f32 %v1917, 0.0
        %v1944 = vmax.f32 %v1919, 0.0
        %v1945 = vmax.f32 %v1921, 0.0
        %v1946 = vmax.f32 %v1923, 0.0
        %v1947 = vmax.f32 %v1927, 0.0
        %v1948 = vmax.f32 %v1929, 0.0
        %v1949 = vmax.f32 %v1931, 0.0
        %v1950 = vmax.f32 %v1933, 0.0
        %v1951 = vmax.f32 %v1935, %v1936
        %v1952 = vmax.f32 %v1937, %v1938
        %v1953 = vmax.f32 %v1939, %v1940
        %v1954 = vmax.f32 %v1941, %v1942
        %v1955 = vmax.f32 %v1943, %v1944
        %v1956 = vmax.f32 %v1945, %v1946
        %v1957 = vmax.f32 %v1947, %v1948
        %v1958 = vmax.f32 %v1949, %v1950
        %1959 = vst [vmem:[#allocation2] sm:$0xff] %v1951
        %1960 = vst [vmem:[#allocation2 + $0x8] sm:$0xff] %v1952
        %1961 = vst [vmem:[#allocation2 + $0x10] sm:$0xff] %v1953
        %1962 = vst [vmem:[#allocation2 + $0x18] sm:$0xff] %v1954
        %1963 = vst [vmem:[#allocation2 + $0x20] sm:$0xff] %v1955
        %1964 = vst [vmem:[#allocation2 + $0x28] sm:$0xff] %v1956
        %1965 = vst [vmem:[#allocation2 + $0x30] sm:$0xff] %v1957
        %1966 = vst [vmem:[#allocation2 + $0x38] sm:$0xff] %v1958
        %v1967 = vld [vmem:[#allocation2] ss:$2 sm:$0xff]
        %s1968 = scalar_lea.vmem [#allocation2], 16
        %v1969 = vld [vmem:[%s1968] ss:$2 sm:$0xff]
        %s1970 = scalar_lea.vmem [#allocation2], 32
        %v1971 = vld [vmem:[%s1970] ss:$2 sm:$0xff]
        %s1972 = scalar_lea.vmem [#allocation2], 48
        %v1973 = vld [vmem:[%s1972] ss:$2 sm:$0xff]
        %v1974 = vld [vmem:[%s1237] ss:$2 sm:$0xff]
        %v1975 = vld [vmem:[%s1239] ss:$2 sm:$0xff]
        %v1976 = vld [vmem:[%s1241] ss:$2 sm:$0xff]
        %v1977 = vld [vmem:[%s1243] ss:$2 sm:$0xff]
        %v1978 = vmax.f32 %v1967, %v1974
        %v1979 = vmax.f32 %v1969, %v1975
        %v1980 = vmax.f32 %v1971, %v1976
        %v1981 = vmax.f32 %v1973, %v1977
        %v1982 = vpack.c.bf16 %v1979, %v1978
        %v1983 = vpack.c.bf16 %v1981, %v1980
        %v1984 = vld [vmem:[%s5] sm:$0xff]
        %v1985 = vld [vmem:[%s5 + $0x8] sm:$0xff]
        %v1986 = vld [vmem:[%s5 + $0x10] sm:$0xff]
        %v1987 = vld [vmem:[%s5 + $0x18] sm:$0xff]
        %v1988 = vld [vmem:[%s5 + $0x20] sm:$0xff]
        %v1989 = vld [vmem:[%s5 + $0x28] sm:$0xff]
        %v1990 = vld [vmem:[%s5 + $0x30] sm:$0xff]
        %v1991 = vld [vmem:[%s5 + $0x38] sm:$0xff]
        %v1992 = vld [vmem:[%s5 + $0x40] sm:$0xff]
        %v1993 = vld [vmem:[%s5 + $0x48] sm:$0xff]
        %v1994 = vld [vmem:[%s5 + $0x50] sm:$0xff]
        %v1995 = vld [vmem:[%s5 + $0x58] sm:$0xff]
        %v1996 = vld [vmem:[%s5 + $0x60] sm:$0xff]
        %v1997 = vld [vmem:[%s5 + $0x68] sm:$0xff]
        %v1998 = vld [vmem:[%s5 + $0x70] sm:$0xff]
        %v1999 = vld [vmem:[%s5 + $0x78] sm:$0xff]
        %v2000 = vld [vmem:[%s6] sm:$0x3]
        %v2002 = vlaneseq
        %v2003 = vshrl.u32 %v2002, 7
        %v2004 = vsub.s32 0, %v2003
        %v2005 = vrot.slane %v2000, %v2004
        %v2006 = vlaneseq
        %v2007 = vshrl.u32 %v2006, 7
        %v2008 = vsub.s32 1, %v2007
        %v2009 = vrot.slane %v2000, %v2008
        %v2028 = vunpack.c.l.b16 %v1984
        %v2029 = vunpack.c.h.b16 %v1984
        %v2030 = vunpack.c.l.b16 %v1985
        %v2031 = vunpack.c.h.b16 %v1985
        %v2032 = vunpack.c.l.b16 %v1986
        %v2033 = vunpack.c.h.b16 %v1986
        %v2034 = vunpack.c.l.b16 %v1987
        %v2035 = vunpack.c.h.b16 %v1987
        %v2036 = vunpack.c.l.b16 %v1988
        %v2037 = vunpack.c.h.b16 %v1988
        %v2038 = vunpack.c.l.b16 %v1989
        %v2039 = vunpack.c.h.b16 %v1989
        %v2040 = vunpack.c.l.b16 %v1990
        %v2041 = vunpack.c.h.b16 %v1990
        %v2042 = vunpack.c.l.b16 %v1991
        %v2043 = vunpack.c.h.b16 %v1991
        %v2044 = vunpack.c.l.b16 %v1992
        %v2045 = vunpack.c.h.b16 %v1992
        %v2046 = vunpack.c.l.b16 %v1993
        %v2047 = vunpack.c.h.b16 %v1993
        %v2048 = vunpack.c.l.b16 %v1994
        %v2049 = vunpack.c.h.b16 %v1994
        %v2050 = vunpack.c.l.b16 %v1995
        %v2051 = vunpack.c.h.b16 %v1995
        %v2052 = vunpack.c.l.b16 %v1996
        %v2053 = vunpack.c.h.b16 %v1996
        %v2054 = vunpack.c.l.b16 %v1997
        %v2055 = vunpack.c.h.b16 %v1997
        %v2056 = vunpack.c.l.b16 %v1998
        %v2057 = vunpack.c.h.b16 %v1998
        %v2058 = vunpack.c.l.b16 %v1999
        %v2059 = vunpack.c.h.b16 %v1999
        %v2060 = vpack.c.b16 %v2030, %v2028
        %v2061 = vpack.c.b16 %v2031, %v2029
        %v2062 = vpack.c.b16 %v2034, %v2032
        %v2063 = vpack.c.b16 %v2035, %v2033
        %v2064 = vpack.c.b16 %v2038, %v2036
        %v2065 = vpack.c.b16 %v2039, %v2037
        %v2066 = vpack.c.b16 %v2042, %v2040
        %v2067 = vpack.c.b16 %v2043, %v2041
        %v2068 = vpack.c.b16 %v2046, %v2044
        %v2069 = vpack.c.b16 %v2047, %v2045
        %v2070 = vpack.c.b16 %v2050, %v2048
        %v2071 = vpack.c.b16 %v2051, %v2049
        %v2072 = vpack.c.b16 %v2054, %v2052
        %v2073 = vpack.c.b16 %v2055, %v2053
        %v2074 = vpack.c.b16 %v2058, %v2056
        %v2075 = vpack.c.b16 %v2059, %v2057
        %2092 = vmatprep.subr.bf16.mxu0 %v2061
        %2093 = vmatpush1.bf16.msra.mxu0 %v2060
        %2094 = vmatprep.subr.bf16.mxu0 %v2063
        %2095 = vmatpush1.bf16.msra.mxu0 %v2062
        %2096 = vmatprep.subr.bf16.mxu0 %v2065
        %2097 = vmatpush1.bf16.msra.mxu0 %v2064
        %2098 = vmatprep.subr.bf16.mxu0 %v2067
        %2099 = vmatpush1.bf16.msra.mxu0 %v2066
        %2100 = vmatprep.subr.bf16.mxu0 %v2069
        %2101 = vmatpush1.bf16.msra.mxu0 %v2068
        %2102 = vmatprep.subr.bf16.mxu0 %v2071
        %2103 = vmatpush1.bf16.msra.mxu0 %v2070
        %2104 = vmatprep.subr.bf16.mxu0 %v2073
        %2105 = vmatpush1.bf16.msra.mxu0 %v2072
        %2106 = vmatprep.subr.bf16.mxu0 %v2075
        %2107 = vmatpush1.bf16.msra.mxu0 %v2074
        %2108 = vmatprep.subr.bf16.mxu0 0
        %2109 = vmatpush1.bf16.msra.mxu0 0
        %2110 = vmatprep.subr.bf16.mxu0 0
        %2111 = vmatpush1.bf16.msra.mxu0 0
        %2112 = vmatprep.subr.bf16.mxu0 0
        %2113 = vmatpush1.bf16.msra.mxu0 0
        %2114 = vmatprep.subr.bf16.mxu0 0
        %2115 = vmatpush1.bf16.msra.mxu0 0
        %2116 = vmatprep.subr.bf16.mxu0 0
        %2117 = vmatpush1.bf16.msra.mxu0 0
        %2118 = vmatprep.subr.bf16.mxu0 0
        %2119 = vmatpush1.bf16.msra.mxu0 0
        %2120 = vmatprep.subr.bf16.mxu0 0
        %2121 = vmatpush1.bf16.msra.mxu0 0
        %2122 = vmatprep.subr.bf16.mxu0 0
        %2123 = vmatpush1.bf16.msra.mxu0 0
        %2124 = vmatprep.mubr.bf16.mxu0 0
        %2125 = vmatmul.mubr.bf16.gmra.mrb[0].mxu0 %v1982
        %v2126 = vpop.f32.mrb[0].mxu0
        %v2127 = vadd.f32 %v2005, %v2126
        %v2128 = vpop.f32.mrb[0].mxu0
        %v2129 = vadd.f32 %v2009, %v2128
        %v2130 = vpop.f32.mrb[0].mxu0
        %v2131 = vadd.f32 %v2005, %v2130
        %v2132 = vpop.f32.mrb[0].mxu0
        %v2133 = vadd.f32 %v2009, %v2132
        %2134 = vmatprep.mubr.bf16.mxu0 0
        %2135 = vmatmul.mubr.bf16.gmra.mrb[0].mxu0 %v1983
        %v2136 = vpop.f32.mrb[0].mxu0
        %v2137 = vadd.f32 %v2005, %v2136
        %v2138 = vpop.f32.mrb[0].mxu0
        %v2139 = vadd.f32 %v2009, %v2138
        %v2140 = vpop.f32.mrb[0].mxu0
        %v2141 = vadd.f32 %v2005, %v2140
        %v2142 = vpop.f32.mrb[0].mxu0
        %v2143 = vadd.f32 %v2009, %v2142
        %2144 = vdwg.mxu0
        %v2145 = vmax.f32 %v2127, 0.0
        %v2146 = vmax.f32 %v2129, 0.0
        %v2147 = vmax.f32 %v2131, 0.0
        %v2148 = vmax.f32 %v2133, 0.0
        %v2149 = vmax.f32 %v2137, 0.0
        %v2150 = vmax.f32 %v2139, 0.0
        %v2151 = vmax.f32 %v2141, 0.0
        %v2152 = vmax.f32 %v2143, 0.0
        %2153 = vst [vmem:[#allocation3] ss:$2 sm:$0xff] %v2145
        %s2154 = scalar_lea.vmem [#allocation3], 16
        %2155 = vst [vmem:[%s2154] ss:$2 sm:$0xff] %v2147
        %s2156 = scalar_lea.vmem [#allocation3], 32
        %2157 = vst [vmem:[%s2156] ss:$2 sm:$0xff] %v2149
        %s2158 = scalar_lea.vmem [#allocation3], 48
        %2159 = vst [vmem:[%s2158] ss:$2 sm:$0xff] %v2151
        %s2160 = scalar_lea.vmem [#allocation3], 1
        %2161 = vst [vmem:[%s2160] ss:$2 sm:$0xff] %v2146
        %s2162 = scalar_lea.vmem [#allocation3], 17
        %2163 = vst [vmem:[%s2162] ss:$2 sm:$0xff] %v2148
        %s2164 = scalar_lea.vmem [#allocation3], 33
        %2165 = vst [vmem:[%s2164] ss:$2 sm:$0xff] %v2150
        %s2166 = scalar_lea.vmem [#allocation3], 49
        %2167 = vst [vmem:[%s2166] ss:$2 sm:$0xff] %v2152
        %v2168 = vld [vmem:[#allocation3] sm:$0xff]
        %v2169 = vld [vmem:[#allocation3 + $0x8] sm:$0xff]
        %v2170 = vld [vmem:[#allocation3 + $0x10] sm:$0xff]
        %v2171 = vld [vmem:[#allocation3 + $0x18] sm:$0xff]
        %v2172 = vld [vmem:[#allocation3 + $0x20] sm:$0xff]
        %v2173 = vld [vmem:[#allocation3 + $0x28] sm:$0xff]
        %v2174 = vld [vmem:[#allocation3 + $0x30] sm:$0xff]
        %v2175 = vld [vmem:[#allocation3 + $0x38] sm:$0xff]
        %v2176 = vpack.c.bf16 %v2169, %v2168
        %v2177 = vpack.c.bf16 %v2171, %v2170
        %v2178 = vpack.c.bf16 %v2173, %v2172
        %v2179 = vpack.c.bf16 %v2175, %v2174
        %v2180 = vld [vmem:[%s7] sm:$0xf]
        %v2181 = vld [vmem:[%s7 + $0x4] sm:$0xf]
        %v2182 = vld [vmem:[%s7 + $0x8] sm:$0xf]
        %v2183 = vld [vmem:[%s7 + $0xc] sm:$0xf]
        %v2184 = vld [vmem:[%s7 + $0x10] sm:$0xf]
        %v2185 = vld [vmem:[%s7 + $0x14] sm:$0xf]
        %v2186 = vld [vmem:[%s7 + $0x18] sm:$0xf]
        %v2187 = vld [vmem:[%s7 + $0x1c] sm:$0xf]
        %v2188 = vld [vmem:[%s7 + $0x20] sm:$0xf]
        %v2189 = vld [vmem:[%s7 + $0x24] sm:$0xf]
        %v2190 = vld [vmem:[%s7 + $0x28] sm:$0xf]
        %v2191 = vld [vmem:[%s7 + $0x2c] sm:$0xf]
        %v2192 = vld [vmem:[%s7 + $0x30] sm:$0xf]
        %v2193 = vld [vmem:[%s7 + $0x34] sm:$0xf]
        %v2194 = vld [vmem:[%s7 + $0x38] sm:$0xf]
        %v2195 = vld [vmem:[%s7 + $0x3c] sm:$0xf]
        %v2196 = vld [vmem:[%s8] sm:$0x1]
        %v2198 = vlaneseq
        %v2199 = vshrl.u32 %v2198, 7
        %v2200 = vsub.s32 0, %v2199
        %v2201 = vrot.slane %v2196, %v2200
        %v2219 = vunpack.c.l.b16 %v2180
        %v2220 = vunpack.c.l.b16 %v2181
        %v2221 = vunpack.c.l.b16 %v2182
        %v2222 = vunpack.c.l.b16 %v2183
        %v2223 = vunpack.c.l.b16 %v2184
        %v2224 = vunpack.c.l.b16 %v2185
        %v2225 = vunpack.c.l.b16 %v2186
        %v2226 = vunpack.c.l.b16 %v2187
        %v2227 = vunpack.c.l.b16 %v2188
        %v2228 = vunpack.c.l.b16 %v2189
        %v2229 = vunpack.c.l.b16 %v2190
        %v2230 = vunpack.c.l.b16 %v2191
        %v2231 = vunpack.c.l.b16 %v2192
        %v2232 = vunpack.c.l.b16 %v2193
        %v2233 = vunpack.c.l.b16 %v2194
        %v2234 = vunpack.c.l.b16 %v2195
        %v2235 = vpack.c.b16 %v2220, %v2219
        %v2236 = vpack.c.b16 %v2222, %v2221
        %v2237 = vpack.c.b16 %v2224, %v2223
        %v2238 = vpack.c.b16 %v2226, %v2225
        %v2239 = vpack.c.b16 %v2228, %v2227
        %v2240 = vpack.c.b16 %v2230, %v2229
        %v2241 = vpack.c.b16 %v2232, %v2231
        %v2242 = vpack.c.b16 %v2234, %v2233
        %2251 = vmatprep.subr.bf16.mxu0 0
        %2252 = vmatpush1.bf16.msra.mxu0 %v2235
        %2253 = vmatprep.subr.bf16.mxu0 0
        %2254 = vmatpush1.bf16.msra.mxu0 %v2236
        %2255 = vmatprep.subr.bf16.mxu0 0
        %2256 = vmatpush1.bf16.msra.mxu0 %v2237
        %2257 = vmatprep.subr.bf16.mxu0 0
        %2258 = vmatpush1.bf16.msra.mxu0 %v2238
        %2259 = vmatprep.subr.bf16.mxu0 0
        %2260 = vmatpush1.bf16.msra.mxu0 %v2239
        %2261 = vmatprep.subr.bf16.mxu0 0
        %2262 = vmatpush1.bf16.msra.mxu0 %v2240
        %2263 = vmatprep.subr.bf16.mxu0 0
        %2264 = vmatpush1.bf16.msra.mxu0 %v2241
        %2265 = vmatprep.subr.bf16.mxu0 0
        %2266 = vmatpush1.bf16.msra.mxu0 %v2242
        %2267 = vmatprep.subr.bf16.mxu0 0
        %2268 = vmatpush1.bf16.msra.mxu0 0
        %2269 = vmatprep.subr.bf16.mxu0 0
        %2270 = vmatpush1.bf16.msra.mxu0 0
        %2271 = vmatprep.subr.bf16.mxu0 0
        %2272 = vmatpush1.bf16.msra.mxu0 0
        %2273 = vmatprep.subr.bf16.mxu0 0
        %2274 = vmatpush1.bf16.msra.mxu0 0
        %2275 = vmatprep.subr.bf16.mxu0 0
        %2276 = vmatpush1.bf16.msra.mxu0 0
        %2277 = vmatprep.subr.bf16.mxu0 0
        %2278 = vmatpush1.bf16.msra.mxu0 0
        %2279 = vmatprep.subr.bf16.mxu0 0
        %2280 = vmatpush1.bf16.msra.mxu0 0
        %2281 = vmatprep.subr.bf16.mxu0 0
        %2282 = vmatpush1.bf16.msra.mxu0 0
        %2283 = vmatprep.mubr.bf16.mxu0 0
        %2284 = vmatmul.mubr.bf16.gmra.mrb[0].mxu0 %v2176
        %v2285 = vpop.f32.mrb[0].mxu0
        %v2286 = vadd.f32 %v2201, %v2285
        %v2287 = vpop.f32.mrb[0].mxu0
        %v2288 = vpop.f32.mrb[0].mxu0
        %v2289 = vadd.f32 %v2201, %v2288
        %v2290 = vpop.f32.mrb[0].mxu0
        %2291 = vmatprep.mubr.bf16.mxu0 0
        %2292 = vmatmul.mubr.bf16.gmra.mrb[0].mxu0 %v2177
        %v2293 = vpop.f32.mrb[0].mxu0
        %v2294 = vadd.f32 %v2201, %v2293
        %v2295 = vpop.f32.mrb[0].mxu0
        %v2296 = vpop.f32.mrb[0].mxu0
        %v2297 = vadd.f32 %v2201, %v2296
        %v2298 = vpop.f32.mrb[0].mxu0
        %2299 = vmatprep.mubr.bf16.mxu0 0
        %2300 = vmatmul.mubr.bf16.gmra.mrb[0].mxu0 %v2178
        %v2301 = vpop.f32.mrb[0].mxu0
        %v2302 = vadd.f32 %v2201, %v2301
        %v2303 = vpop.f32.mrb[0].mxu0
        %v2304 = vpop.f32.mrb[0].mxu0
        %v2305 = vadd.f32 %v2201, %v2304
        %v2306 = vpop.f32.mrb[0].mxu0
        %2307 = vmatprep.mubr.bf16.mxu0 0
        %2308 = vmatmul.mubr.bf16.gmra.mrb[0].mxu0 %v2179
        %v2309 = vpop.f32.mrb[0].mxu0
        %v2310 = vadd.f32 %v2201, %v2309
        %v2311 = vpop.f32.mrb[0].mxu0
        %v2312 = vpop.f32.mrb[0].mxu0
        %v2313 = vadd.f32 %v2201, %v2312
        %v2314 = vpop.f32.mrb[0].mxu0
        %2315 = vdwg.mxu0
        %2316 = vst [vmem:[%s326] ss:$2 sm:$0xff] %v2286
        %s2317 = scalar_lea.vmem %s326, 16 [#allocation4]
        %2318 = vst [vmem:[%s2317] ss:$2 sm:$0xff] %v2289
        %s2319 = scalar_lea.vmem %s326, 32 [#allocation4]
        %2320 = vst [vmem:[%s2319] ss:$2 sm:$0xff] %v2294
        %s2321 = scalar_lea.vmem %s326, 48 [#allocation4]
        %2322 = vst [vmem:[%s2321] ss:$2 sm:$0xff] %v2297
        %s2323 = scalar_lea.vmem %s326, 64 [#allocation4]
        %2324 = vst [vmem:[%s2323] ss:$2 sm:$0xff] %v2302
        %s2325 = scalar_lea.vmem %s326, 80 [#allocation4]
        %2326 = vst [vmem:[%s2325] ss:$2 sm:$0xff] %v2305
        %s2327 = scalar_lea.vmem %s326, 96 [#allocation4]
        %2328 = vst [vmem:[%s2327] ss:$2 sm:$0xff] %v2310
        %s2329 = scalar_lea.vmem %s326, 112 [#allocation4]
        %2330 = vst [vmem:[%s2329] ss:$2 sm:$0xff] %v2313
        %2339 = vrot.lane.b32.xlu0 %v2286, 112
        %v2340 = vpop.permute.xlu0 %2339
        %2341 = vrot.lane.b32.xlu0 %v2289, 112
        %v2342 = vpop.permute.xlu0 %2341
        %2343 = vrot.lane.b32.xlu0 %v2294, 112
        %v2344 = vpop.permute.xlu0 %2343
        %2345 = vrot.lane.b32.xlu0 %v2297, 112
        %v2346 = vpop.permute.xlu0 %2345
        %2347 = vrot.lane.b32.xlu0 %v2302, 112
        %v2348 = vpop.permute.xlu0 %2347
        %2349 = vrot.lane.b32.xlu0 %v2305, 112
        %v2350 = vpop.permute.xlu0 %2349
        %2351 = vrot.lane.b32.xlu0 %v2310, 112
        %v2352 = vpop.permute.xlu0 %2351
        %2353 = vrot.lane.b32.xlu0 %v2313, 112
        %v2354 = vpop.permute.xlu0 %2353
        %s2363 = scalar_lea.vmem %s326, 1 [#allocation4]
        %2364 = vst [vmem:[%s2363] ss:$2 sm:$0xff] %v2340
        %s2365 = scalar_lea.vmem %s326, 17 [#allocation4]
        %2366 = vst [vmem:[%s2365] ss:$2 sm:$0xff] %v2342
        %s2367 = scalar_lea.vmem %s326, 33 [#allocation4]
        %2368 = vst [vmem:[%s2367] ss:$2 sm:$0xff] %v2344
        %s2369 = scalar_lea.vmem %s326, 49 [#allocation4]
        %2370 = vst [vmem:[%s2369] ss:$2 sm:$0xff] %v2346
        %s2371 = scalar_lea.vmem %s326, 65 [#allocation4]
        %2372 = vst [vmem:[%s2371] ss:$2 sm:$0xff] %v2348
        %s2373 = scalar_lea.vmem %s326, 81 [#allocation4]
        %2374 = vst [vmem:[%s2373] ss:$2 sm:$0xff] %v2350
        %s2375 = scalar_lea.vmem %s326, 97 [#allocation4]
        %2376 = vst [vmem:[%s2375] ss:$2 sm:$0xff] %v2352
        %s2377 = scalar_lea.vmem %s326, 113 [#allocation4]
        %2378 = vst [vmem:[%s2377] ss:$2 sm:$0xff] %v2354
        %s2379 = sand.u32 %s225, 1
        %s2380 = scalar_lea.sflag [#allocation5], %s2379
        %s2381 = sand.u32 %s225, 1
        %s2382 = smul.addr %s2381, 128
        %s2383 = scalar_lea.vmem [#allocation4], %s2382
        // Predicated region
        $region57: #{cae_forward.1} parent=55 // pred_check
          %p2384 = pneg %p235
        $region58: #{cae_forward.1} parent=55 // pred_check_branch
          %2386 = sbr.rel (%p2384) target = $region60
        $region59: #{cae_forward.1} parent=55 // pred_region
          %s2387 = smul.u32 16, %s23
          %s2389 = ssub.s32 2048, 2048
          %2390 = vsyncadd %s2380, %s2389
          %s2391 = smul.addr %s2387, 128
          %s2392 = scalar_lea.hbm %s9, %s2391
          %s2393 = sshll.u32 %s2383, 4
          %s2394 = int_to_ptr.vmem [resolvable:$true] %s2393
          %2399 = dma.vmem_to_hbm [thread:$0]  %s2394, 2048, %s2392, %s2380, 128, 128, 8
        $region60: #{cae_forward.1} parent=55 // pred_fallthru
          _
      $region56: #{cae_forward.1} parent=5 // pred_fallthru
        _
      %p2400 = scmp.le.s32.totalorder 2, %s18
      // Predicated region
      $region61: #{cae_forward.1} parent=5 // pred_check
        %p2401 = pneg %p2400
      $region62: #{cae_forward.1} parent=5 // pred_check_branch
        %2403 = sbr.rel (%p2401) target = $region64
      $region63: #{cae_forward.1} parent=5 // pred_region
        %s2404 = ssub.s32 %s18, 2
        // Predicated region
        $region65: #{cae_forward.1} parent=63 // pred_check
          %p2405 = pneg %p241
        $region66: #{cae_forward.1} parent=63 // pred_check_branch
          %2407 = sbr.rel (%p2405) target = $region68
        $region67: #{cae_forward.1} parent=63 // pred_region
          %s2408 = sand.u32 %s226, 1
          %s2409 = scalar_lea.sflag [#allocation5], %s2408
          %s2410 = sand.u32 %s226, 1
          %s2411 = smul.addr %s2410, 128
          %s2412 = scalar_lea.vmem [#allocation4], %s2411
          %2413 = dma.done %s2409, 2048
        $region68: #{cae_forward.1} parent=63 // pred_fallthru
          _
      $region64: #{cae_forward.1} parent=5 // pred_fallthru
        _
    $region6: #{cae_forward.1} parent=1 // loop_footer
      %s22 = sadd.s32 1, %s18
    $region7: #{cae_forward.1} parent=1 // loop_footer_branch
      %17 = sbr.rel target = $region3
    $region8: #{cae_forward.1} parent=1 // loop_exit
      _
    %2414 = vsyncpa [#allocation5], 1
    %s2415 = scalar_lea.sflag [#allocation5], 1
    %2416 = vsyncpa %s2415, 1

</llo_original>
